<compile_context>
chip_gen: v7x
topology: tpu7x:2x2x1
jax: 0.10.0
libtpu: 0.0.40
codegen_flags: <defaults>
</compile_context>

<pallas_src>
import jax
import jax.numpy as jnp
from jax.experimental import pallas as pl
from jax.experimental.pallas import tpu as pltpu


# ---------------------------------------------------------------------------
# Fused kernel: ALL GNN layers + GraphEmb pooling, grid over layers
# ---------------------------------------------------------------------------
def gnn_encoder_kernel(h0_ref, gsrcT_ref, bscat_ref,
                       wms_ref, wmd_ref, bm_ref,
                       wrs_ref, wrd_ref, bmr_ref,
                       wi_ref, bi_ref, wh_ref, bh_ref,
                       wf_ref, bf_ref, wg_ref, bg_ref,
                       out_ref, h_ref):
    layer = pl.program_id(0)
    f32 = jnp.float32
    bf16 = jnp.bfloat16

    @pl.when(layer == 0)
    def _():
        h_ref[...] = h0_ref[...]          # initialize the VMEM-resident hidden state

    h = h_ref[...]                         # [ndim, N] f32, resident across layers
    ndim = h.shape[0]
    gsrcT = gsrcT_ref[...]                 # [N, 2E] bf16 one-hot of doubled-edge sources
    E = gsrcT.shape[1] // 2

    # gather per-edge node features on the native bf16 MXU path (0/1 one-hot => exact pick
    # of bf16-rounded h), accumulate in f32.
    hs = jnp.dot(h.astype(bf16), gsrcT, preferred_element_type=f32)   # [ndim, 2E]
    hs_src = hs[:, :E]     # features of edge_index[0]  (original sources)
    hs_dst = hs[:, E:]     # features of edge_index[1]  (original targets)

    # message(): first E edges -> msg, reversed E edges -> msg_rev (pre-split weights, f32)
    a1 = (jnp.dot(wms_ref[...], hs_src, preferred_element_type=f32)
          + jnp.dot(wmd_ref[...], hs_dst, preferred_element_type=f32)
          + bm_ref[...])                                               # [2*ndim, E]
    a2 = (jnp.dot(wrs_ref[...], hs_dst, preferred_element_type=f32)
          + jnp.dot(wrd_ref[...], hs_src, preferred_element_type=f32)
          + bmr_ref[...])                                              # [2*ndim, E]

    # aggregate: scatter-add over edge targets == NT contraction against the SAME one-hot
    # (gdstT[:, :E] == gsrcT[:, E:], gdstT[:, E:] == gsrcT[:, :E] for the doubled edge list)
    NT = (((1,), (1,)), ((), ()))
    aggr = (jax.lax.dot_general(a1.astype(bf16), gsrcT[:, E:], NT, preferred_element_type=f32)
            + jax.lax.dot_general(a2.astype(bf16), gsrcT[:, :E], NT,
                                  preferred_element_type=f32))         # [2*ndim, N]

    # update(): GRUCell(aggr, h) with fused gate weights (rows ordered r, z, n), f32 math
    gi = jnp.dot(wi_ref[...], aggr, preferred_element_type=f32) + bi_ref[...]   # [3*ndim, N]
    gh = jnp.dot(wh_ref[...], h, preferred_element_type=f32) + bh_ref[...]      # [3*ndim, N]
    r = jax.nn.sigmoid(gi[:ndim] + gh[:ndim])
    z = jax.nn.sigmoid(gi[ndim:2 * ndim] + gh[ndim:2 * ndim])
    n = jnp.tanh(gi[2 * ndim:] + r * gh[2 * ndim:])
    h_new = (1.0 - z) * n + z * h
    h_ref[...] = h_new

    # GraphEmb mean & var heads fused into the last layer iteration (gated sum-pool)
    @pl.when(layer == pl.num_programs(0) - 1)
    def _():
        f = jnp.dot(wf_ref[...], h_new, preferred_element_type=f32) + bf_ref[...]   # [2*gdim, N]
        g = jax.nn.sigmoid(jnp.dot(wg_ref[...], h_new, preferred_element_type=f32)
                           + bg_ref[...])                                            # [2, N]
        gdim = f.shape[0] // 2
        gated = jnp.concatenate([f[:gdim] * g[0:1, :], f[gdim:] * g[1:2, :]], axis=0)
        out_ref[...] = jax.lax.dot_general(bscat_ref[...].astype(f32), gated, NT,
                                           preferred_element_type=f32)               # [B, 2*gdim]


# ---------------------------------------------------------------------------
# Parameter preparation (feature-major, pre-split / fused weight stacks)
# ---------------------------------------------------------------------------
def _prepare_layer_stacks(layers, ndim):
    """Pre-split / pre-transpose per-layer weights and stack along a leading layer axis."""
    cols = [[] for _ in range(10)]
    for (wm, bm, wmr, bmr, wih, bih, whh, bhh) in layers:
        vals = (
            wm[:ndim].T, wm[ndim:].T, bm.T,        # msg: src half, dst half, bias
            wmr[:ndim].T, wmr[ndim:].T, bmr.T,     # msg_rev
            wih.T, bih.T,                          # GRU input side  [3n,2n], [3n,1] (r,z,n rows)
            whh.T, bhh.T,                          # GRU hidden side [3n,n],  [3n,1]
        )
        for c, v in zip(cols, vals):
            c.append(v)
    return tuple(jnp.stack(c, axis=0) for c in cols)


def _prepare_graph_params(graph):
    wfm, bfm, wgm, bgm, wfv, bfv, wgv, bgv = graph
    wf = jnp.concatenate([wfm.T, wfv.T], axis=0)   # [2*gdim, ndim]
    bf = jnp.concatenate([bfm.T, bfv.T], axis=0)   # [2*gdim, 1]
    wg = jnp.concatenate([wgm, wgv], axis=0)       # [2, ndim]
    bg = jnp.concatenate([bgm, bgv], axis=0)       # [2, 1]
    return (wf, bf, wg, bg)


def _vmem_limit_bytes(frac=0.75):
    # Scoped-VMEM limit derived per generation (64 MiB/TC on v7x, 128 MiB on v5e/v6e).
    try:
        cap = int(pltpu.get_tpu_info().vmem_capacity_bytes)
    except Exception:
        cap = 64 * 1024 * 1024
    return max(32 * 1024 * 1024, min(int(cap * frac), 128 * 1024 * 1024))


# ---------------------------------------------------------------------------
# pallas_call wrapper
# ---------------------------------------------------------------------------
def run_gnn_encoder(hT0, gsrcT, bscat, stacks, gparams, num_layers):
    ndim, N = hT0.shape
    B = bscat.shape[0]
    E2 = gsrcT.shape[1]
    E = E2 // 2
    two_gdim = gparams[0].shape[0]

    def const_spec(shape):
        return pl.BlockSpec(shape, lambda l: (0,) * len(shape))

    def stacked_spec(arr):
        _, r, c = arr.shape
        return pl.BlockSpec((None, r, c), lambda l: (l, 0, 0))

    in_specs = ([const_spec(hT0.shape), const_spec(gsrcT.shape), const_spec(bscat.shape)]
                + [stacked_spec(w) for w in stacks]
                + [const_spec(p.shape) for p in gparams])

    flops = 2 * num_layers * (
        ndim * N * E2                    # single one-hot gather
        + 4 * (2 * ndim) * ndim * E      # message linears
        + 2 * (2 * ndim) * E * N         # scatter-add contractions
        + (3 * ndim) * (2 * ndim) * N    # GRU input-side matmul
        + (3 * ndim) * ndim * N          # GRU hidden-side matmul
    ) + 2 * (two_gdim * ndim * N + 2 * ndim * N + B * N * two_gdim)   # fused pooling epilogue
    transcendentals = num_layers * 3 * ndim * N + 2 * N
    bytes_accessed = (sum(int(x.size) * x.dtype.itemsize
                          for x in (hT0, gsrcT, bscat) + stacks + gparams)
                      + B * two_gdim * 4)

    return pl.pallas_call(
        gnn_encoder_kernel,
        out_shape=jax.ShapeDtypeStruct((B, two_gdim), jnp.float32),
        grid=(num_layers,),
        in_specs=in_specs,
        out_specs=const_spec((B, two_gdim)),
        scratch_shapes=[pltpu.VMEM((ndim, N), jnp.float32)],   # resident hidden state
        compiler_params=pltpu.CompilerParams(
            dimension_semantics=("arbitrary",),                # layers are sequentially dependent
            vmem_limit_bytes=_vmem_limit_bytes()),
        cost_estimate=pl.CostEstimate(flops=flops, transcendentals=transcendentals,
                                      bytes_accessed=bytes_accessed),
    )(hT0, gsrcT, bscat, *stacks, *gparams)


def gnn_encoder_forward(edge_index, node_atts, batch, params, N, B):
    ndim = params["node_init"].shape[1]
    gdim = params["graph"][0].shape[1]
    num_layers = len(params["layers"])

    # NodeInit embedding lookup (XLA glue; dropout p=0.0 is identity), feature-major layout
    hT0 = params["node_init"][node_atts].T                                    # [ndim, N]

    # doubled edge list: edge_index <- cat([ei, ei[[1,0]]], dim=1).  Only the SOURCE one-hot
    # is needed: the target one-hot is its two halves swapped.
    src_full = jnp.concatenate([edge_index[0], edge_index[1]], axis=0)        # [2E]
    node_ids = jnp.arange(N, dtype=jnp.int32)[:, None]
    gsrcT = (node_ids == src_full[None, :]).astype(jnp.bfloat16)              # [N, 2E]

    bscat = (jnp.arange(B, dtype=jnp.int32)[:, None]
             == batch[None, :]).astype(jnp.bfloat16)                          # [B, N]

    stacks = _prepare_layer_stacks(params["layers"], ndim)
    gparams = _prepare_graph_params(params["graph"])
    pooled = run_gnn_encoder(hT0, gsrcT, bscat, stacks, gparams, num_layers)  # [B, 2*gdim]
    return pooled[:, :gdim], pooled[:, gdim:]


# ---------------------------------------------------------------------------
# Pure-JAX reference (mirrors the PyTorch forward semantics, all f32)
# ---------------------------------------------------------------------------
def ref_forward(edge_index, node_atts, batch, params, N, B):
    h = params["node_init"][node_atts]
    ei = jnp.concatenate([edge_index, edge_index[jnp.array([1, 0])]], axis=1)
    src, dst = ei[0], ei[1]
    E = edge_index.shape[1]
    for (wm, bm, wmr, bmr, wih, bih, whh, bhh) in params["layers"]:
        m = jnp.concatenate([h[src], h[dst]], axis=1)
        a = jnp.concatenate([m[:E] @ wm + bm, m[E:] @ wmr + bmr], axis=0)
        aggr = jnp.zeros((N, a.shape[1]), jnp.float32).at[dst].add(a)
        gx = aggr @ wih + bih
        gh = h @ whh + bhh
        ndim = h.shape[1]
        r = jax.nn.sigmoid(gx[:, :ndim] + gh[:, :ndim])
        z = jax.nn.sigmoid(gx[:, ndim:2 * ndim] + gh[:, ndim:2 * ndim])
        n = jnp.tanh(gx[:, 2 * ndim:] + r * gh[:, 2 * ndim:])
        h = (1.0 - z) * n + z * h
    wfm, bfm, wgm, bgm, wfv, bfv, wgv, bgv = params["graph"]

    def gemb(wf, bf, wg, bg):
        hv = h @ wf + bf
        g = jax.nn.sigmoid(jnp.sum(h * wg, axis=1, keepdims=True) + bg)
        return jnp.zeros((B, hv.shape[1]), jnp.float32).at[batch].add(hv * g)

    return gemb(wfm, bfm, wgm, bgm), gemb(wfv, bfv, wgv, bgv)


# ---------------------------------------------------------------------------
# Deterministic parameter init (weights stored pre-transposed for x @ W)
# ---------------------------------------------------------------------------
def init_params(key, ndim, gdim, num_layers, num_node_atts):
    def nrm(k, shape, scale=0.1):
        return jax.random.normal(k, shape, dtype=jnp.float32) * scale

    keys = iter(jax.random.split(key, 8 * num_layers + 12))
    node_init = nrm(next(keys), (num_node_atts, ndim), 1.0)   # nn.Embedding table
    layers = []
    for _ in range(num_layers):
        layers.append((
            nrm(next(keys), (2 * ndim, 2 * ndim)), nrm(next(keys), (1, 2 * ndim)),  # msg
            nrm(next(keys), (2 * ndim, 2 * ndim)), nrm(next(keys), (1, 2 * ndim)),  # msg_rev
            nrm(next(keys), (2 * ndim, 3 * ndim)), nrm(next(keys), (1, 3 * ndim)),  # GRU W_ih^T, b_ih
            nrm(next(keys), (ndim, 3 * ndim)), nrm(next(keys), (1, 3 * ndim)),      # GRU W_hh^T, b_hh
        ))
    graph = (
        nrm(next(keys), (ndim, gdim)), nrm(next(keys), (1, gdim)),  # f_m (mean)
        nrm(next(keys), (1, ndim)), nrm(next(keys), (1, 1)),        # g_m (mean)
        nrm(next(keys), (ndim, gdim)), nrm(next(keys), (1, gdim)),  # f_m (var)
        nrm(next(keys), (1, ndim)), nrm(next(keys), (1, 1)),        # g_m (var)
    )
    return {"node_init": node_init, "layers": layers, "graph": graph}


if __name__ == "__main__":
    key = jax.random.PRNGKey(0)
    k_param, k_edge, k_atts = jax.random.split(key, 3)

    ndim, gdim, num_gnn_layers, num_node_atts = 16, 32, 2, 5
    N, E, B = 8, 8, 2   # 8 nodes, 8 directed edges (doubled internally), 2 graphs

    params = init_params(k_param, ndim, gdim, num_gnn_layers, num_node_atts)
    edge_index = jax.random.randint(k_edge, (2, E), 0, N, dtype=jnp.int32)
    node_atts = jax.random.randint(k_atts, (N,), 0, num_node_atts, dtype=jnp.int32)
    batch = jnp.array([0, 0, 0, 0, 1, 1, 1, 1], dtype=jnp.int32)

    h_G_mean, h_G_var = gnn_encoder_forward(edge_index, node_atts, batch, params, N, B)
    jax.block_until_ready((h_G_mean, h_G_var))

    ref_mean, ref_var = ref_forward(edge_index, node_atts, batch, params, N, B)
    assert h_G_mean.shape == (B, gdim) and h_G_var.shape == (B, gdim)
    # Tolerance covers the bf16 rounding of the MXU gather/scatter path (f32 accumulation
    # and f32 GRU/pooling math are kept, so errors stay within bf16 precision of h / a1 / a2).
    assert jnp.allclose(h_G_mean, ref_mean, atol=1e-2, rtol=1e-2)
    assert jnp.allclose(h_G_var, ref_var, atol=1e-2, rtol=1e-2)

    print("KERNEL_OK")
</pallas_src>

<mosaic_0001>
module attributes {stable_mosaic.version = 11 : i64} {
  func.func @gnn_encoder_kernel(%arg0: i32, %arg1: memref<16x8xf32, #tpu.memory_space<vmem>>, %arg2: memref<8x16xbf16, #tpu.memory_space<vmem>>, %arg3: memref<2x8xbf16, #tpu.memory_space<vmem>>, %arg4: memref<1x32x16xf32, #tpu.memory_space<vmem>>, %arg5: memref<1x32x16xf32, #tpu.memory_space<vmem>>, %arg6: memref<1x32x1xf32, #tpu.memory_space<vmem>>, %arg7: memref<1x32x16xf32, #tpu.memory_space<vmem>>, %arg8: memref<1x32x16xf32, #tpu.memory_space<vmem>>, %arg9: memref<1x32x1xf32, #tpu.memory_space<vmem>>, %arg10: memref<1x48x32xf32, #tpu.memory_space<vmem>>, %arg11: memref<1x48x1xf32, #tpu.memory_space<vmem>>, %arg12: memref<1x48x16xf32, #tpu.memory_space<vmem>>, %arg13: memref<1x48x1xf32, #tpu.memory_space<vmem>>, %arg14: memref<64x16xf32, #tpu.memory_space<vmem>>, %arg15: memref<64x1xf32, #tpu.memory_space<vmem>>, %arg16: memref<2x16xf32, #tpu.memory_space<vmem>>, %arg17: memref<2x1xf32, #tpu.memory_space<vmem>>, %arg18: memref<2x64xf32, #tpu.memory_space<vmem>>, %arg19: memref<16x8xf32, #tpu.memory_space<vmem>>) attributes {dimension_semantics = [#tpu.dimension_semantics<arbitrary>], iteration_bounds = array<i64: 2>, scalar_prefetch = 0 : i64, scratch_operands = 1 : i64, tpu.core_type = #tpu.core_type<tc>, window_params = [{pipeline_mode = #tpu.pipeline_mode<synchronous>, transform_indices = @transform_0, window_bounds = array<i64: 16, 8>}, {pipeline_mode = #tpu.pipeline_mode<synchronous>, transform_indices = @transform_1, window_bounds = array<i64: 8, 16>}, {pipeline_mode = #tpu.pipeline_mode<synchronous>, transform_indices = @transform_2, window_bounds = array<i64: 2, 8>}, {transform_indices = @transform_3, window_bounds = array<i64: 1, 32, 16>}, {transform_indices = @transform_4, window_bounds = array<i64: 1, 32, 16>}, {transform_indices = @transform_5, window_bounds = array<i64: 1, 32, 1>}, {transform_indices = @transform_6, window_bounds = array<i64: 1, 32, 16>}, {transform_indices = @transform_7, window_bounds = array<i64: 1, 32, 16>}, {transform_indices = @transform_8, window_bounds = array<i64: 1, 32, 1>}, {transform_indices = @transform_9, window_bounds = array<i64: 1, 48, 32>}, {transform_indices = @transform_10, window_bounds = array<i64: 1, 48, 1>}, {transform_indices = @transform_11, window_bounds = array<i64: 1, 48, 16>}, {transform_indices = @transform_12, window_bounds = array<i64: 1, 48, 1>}, {pipeline_mode = #tpu.pipeline_mode<synchronous>, transform_indices = @transform_13, window_bounds = array<i64: 64, 16>}, {pipeline_mode = #tpu.pipeline_mode<synchronous>, transform_indices = @transform_14, window_bounds = array<i64: 64, 1>}, {pipeline_mode = #tpu.pipeline_mode<synchronous>, transform_indices = @transform_15, window_bounds = array<i64: 2, 16>}, {pipeline_mode = #tpu.pipeline_mode<synchronous>, transform_indices = @transform_16, window_bounds = array<i64: 2, 1>}, {pipeline_mode = #tpu.pipeline_mode<synchronous>, transform_indices = @transform_17, window_bounds = array<i64: 2, 64>}]} {
    %c0_i32 = arith.constant 0 : i32
    %0 = arith.cmpi eq, %arg0, %c0_i32 : i32
    %1 = arith.extui %0 : i1 to i32
    %c0_i32_0 = arith.constant 0 : i32
    %2 = arith.cmpi ne, %1, %c0_i32_0 : i32
    scf.if %2 {
      %c0_48 = arith.constant 0 : index
      %c0_49 = arith.constant 0 : index
      %82 = vector.load %arg1[%c0_48, %c0_49] : memref<16x8xf32, #tpu.memory_space<vmem>>, vector<16x8xf32>
      %c0_50 = arith.constant 0 : index
      %c0_51 = arith.constant 0 : index
      %83 = vector.load %arg19[%c0_50, %c0_51] : memref<16x8xf32, #tpu.memory_space<vmem>>, vector<16x8xf32>
      tpu.vector_store %arg19[%c0_50, %c0_51], %82 {strides = array<i32>} : memref<16x8xf32, #tpu.memory_space<vmem>>, vector<16x8xf32>,
    } else {
    }
    %c0 = arith.constant 0 : index
    %c0_1 = arith.constant 0 : index
    %3 = vector.load %arg19[%c0, %c0_1] : memref<16x8xf32, #tpu.memory_space<vmem>>, vector<16x8xf32>
    %c0_2 = arith.constant 0 : index
    %c0_3 = arith.constant 0 : index
    %4 = vector.load %arg2[%c0_2, %c0_3] : memref<8x16xbf16, #tpu.memory_space<vmem>>, vector<8x16xbf16>
    %5 = arith.truncf %3 : vector<16x8xf32> to vector<16x8xbf16>
    %cst = arith.constant dense<0.000000e+00> : vector<16x16xf32>
    %6 = tpu.matmul %5, %4, %cst {dimension_numbers = #tpu.dot_dimension_numbers<[1], [0], [0], [1], [0, 0, 1, 1], [], []>} : vector<16x8xbf16>, vector<8x16xbf16>, vector<16x16xf32> -> vector<16x16xf32>
    %7 = vector.extract_strided_slice %6 {offsets = [0, 0], sizes = [16, 8], strides = [1, 1]} : vector<16x16xf32> to vector<16x8xf32>
    %8 = vector.extract_strided_slice %6 {offsets = [0, 8], sizes = [16, 8], strides = [1, 1]} : vector<16x16xf32> to vector<16x8xf32>
    %c0_4 = arith.constant 0 : index
    %c0_5 = arith.constant 0 : index
    %c0_6 = arith.constant 0 : index
    %9 = vector.load %arg4[%c0_4, %c0_5, %c0_6] : memref<1x32x16xf32, #tpu.memory_space<vmem>>, vector<1x32x16xf32>
    %10 = vector.shape_cast %9 : vector<1x32x16xf32> to vector<32x16xf32>
    %cst_7 = arith.constant dense<0.000000e+00> : vector<32x8xf32>
    %11 = tpu.matmul %10, %7, %cst_7 {dimension_numbers = #tpu.dot_dimension_numbers<[1], [0], [0], [1], [0, 0, 1, 1], [], []>} : vector<32x16xf32>, vector<16x8xf32>, vector<32x8xf32> -> vector<32x8xf32>
    %c0_8 = arith.constant 0 : index
    %c0_9 = arith.constant 0 : index
    %c0_10 = arith.constant 0 : index
    %12 = vector.load %arg5[%c0_8, %c0_9, %c0_10] : memref<1x32x16xf32, #tpu.memory_space<vmem>>, vector<1x32x16xf32>
    %13 = vector.shape_cast %12 : vector<1x32x16xf32> to vector<32x16xf32>
    %cst_11 = arith.constant dense<0.000000e+00> : vector<32x8xf32>
    %14 = tpu.matmul %13, %8, %cst_11 {dimension_numbers = #tpu.dot_dimension_numbers<[1], [0], [0], [1], [0, 0, 1, 1], [], []>} : vector<32x16xf32>, vector<16x8xf32>, vector<32x8xf32> -> vector<32x8xf32>
    %15 = arith.addf %11, %14 : vector<32x8xf32>
    %c0_12 = arith.constant 0 : index
    %c0_13 = arith.constant 0 : index
    %c0_14 = arith.constant 0 : index
    %16 = vector.load %arg6[%c0_12, %c0_13, %c0_14] : memref<1x32x1xf32, #tpu.memory_space<vmem>>, vector<1x32x1xf32>
    %17 = vector.shape_cast %16 : vector<1x32x1xf32> to vector<32x1xf32>
    %18 = vector.broadcast %17 : vector<32x1xf32> to vector<32x8xf32>
    %19 = arith.addf %15, %18 : vector<32x8xf32>
    %c0_15 = arith.constant 0 : index
    %c0_16 = arith.constant 0 : index
    %c0_17 = arith.constant 0 : index
    %20 = vector.load %arg7[%c0_15, %c0_16, %c0_17] : memref<1x32x16xf32, #tpu.memory_space<vmem>>, vector<1x32x16xf32>
    %21 = vector.shape_cast %20 : vector<1x32x16xf32> to vector<32x16xf32>
    %cst_18 = arith.constant dense<0.000000e+00> : vector<32x8xf32>
    %22 = tpu.matmul %21, %8, %cst_18 {dimension_numbers = #tpu.dot_dimension_numbers<[1], [0], [0], [1], [0, 0, 1, 1], [], []>} : vector<32x16xf32>, vector<16x8xf32>, vector<32x8xf32> -> vector<32x8xf32>
    %c0_19 = arith.constant 0 : index
    %c0_20 = arith.constant 0 : index
    %c0_21 = arith.constant 0 : index
    %23 = vector.load %arg8[%c0_19, %c0_20, %c0_21] : memref<1x32x16xf32, #tpu.memory_space<vmem>>, vector<1x32x16xf32>
    %24 = vector.shape_cast %23 : vector<1x32x16xf32> to vector<32x16xf32>
    %cst_22 = arith.constant dense<0.000000e+00> : vector<32x8xf32>
    %25 = tpu.matmul %24, %7, %cst_22 {dimension_numbers = #tpu.dot_dimension_numbers<[1], [0], [0], [1], [0, 0, 1, 1], [], []>} : vector<32x16xf32>, vector<16x8xf32>, vector<32x8xf32> -> vector<32x8xf32>
    %26 = arith.addf %22, %25 : vector<32x8xf32>
    %c0_23 = arith.constant 0 : index
    %c0_24 = arith.constant 0 : index
    %c0_25 = arith.constant 0 : index
    %27 = vector.load %arg9[%c0_23, %c0_24, %c0_25] : memref<1x32x1xf32, #tpu.memory_space<vmem>>, vector<1x32x1xf32>
    %28 = vector.shape_cast %27 : vector<1x32x1xf32> to vector<32x1xf32>
    %29 = vector.broadcast %28 : vector<32x1xf32> to vector<32x8xf32>
    %30 = arith.addf %26, %29 : vector<32x8xf32>
    %31 = arith.truncf %19 : vector<32x8xf32> to vector<32x8xbf16>
    %32 = vector.extract_strided_slice %4 {offsets = [0, 8], sizes = [8, 8], strides = [1, 1]} : vector<8x16xbf16> to vector<8x8xbf16>
    %cst_26 = arith.constant dense<0.000000e+00> : vector<32x8xf32>
    %33 = tpu.matmul %31, %32, %cst_26 {dimension_numbers = #tpu.dot_dimension_numbers<[1], [1], [0], [0], [0, 0, 1, 0], [], []>} : vector<32x8xbf16>, vector<8x8xbf16>, vector<32x8xf32> -> vector<32x8xf32>
    %34 = arith.truncf %30 : vector<32x8xf32> to vector<32x8xbf16>
    %35 = vector.extract_strided_slice %4 {offsets = [0, 0], sizes = [8, 8], strides = [1, 1]} : vector<8x16xbf16> to vector<8x8xbf16>
    %cst_27 = arith.constant dense<0.000000e+00> : vector<32x8xf32>
    %36 = tpu.matmul %34, %35, %cst_27 {dimension_numbers = #tpu.dot_dimension_numbers<[1], [1], [0], [0], [0, 0, 1, 0], [], []>} : vector<32x8xbf16>, vector<8x8xbf16>, vector<32x8xf32> -> vector<32x8xf32>
    %37 = arith.addf %33, %36 : vector<32x8xf32>
    %c0_28 = arith.constant 0 : index
    %c0_29 = arith.constant 0 : index
    %c0_30 = arith.constant 0 : index
    %38 = vector.load %arg10[%c0_28, %c0_29, %c0_30] : memref<1x48x32xf32, #tpu.memory_space<vmem>>, vector<1x48x32xf32>
    %39 = vector.shape_cast %38 : vector<1x48x32xf32> to vector<48x32xf32>
    %cst_31 = arith.constant dense<0.000000e+00> : vector<48x8xf32>
    %40 = tpu.matmul %39, %37, %cst_31 {dimension_numbers = #tpu.dot_dimension_numbers<[1], [0], [0], [1], [0, 0, 1, 1], [], []>} : vector<48x32xf32>, vector<32x8xf32>, vector<48x8xf32> -> vector<48x8xf32>
    %c0_32 = arith.constant 0 : index
    %c0_33 = arith.constant 0 : index
    %c0_34 = arith.constant 0 : index
    %41 = vector.load %arg11[%c0_32, %c0_33, %c0_34] : memref<1x48x1xf32, #tpu.memory_space<vmem>>, vector<1x48x1xf32>
    %42 = vector.shape_cast %41 : vector<1x48x1xf32> to vector<48x1xf32>
    %43 = vector.broadcast %42 : vector<48x1xf32> to vector<48x8xf32>
    %44 = arith.addf %40, %43 : vector<48x8xf32>
    %c0_35 = arith.constant 0 : index
    %c0_36 = arith.constant 0 : index
    %c0_37 = arith.constant 0 : index
    %45 = vector.load %arg12[%c0_35, %c0_36, %c0_37] : memref<1x48x16xf32, #tpu.memory_space<vmem>>, vector<1x48x16xf32>
    %46 = vector.shape_cast %45 : vector<1x48x16xf32> to vector<48x16xf32>
    %cst_38 = arith.constant dense<0.000000e+00> : vector<48x8xf32>
    %47 = tpu.matmul %46, %3, %cst_38 {dimension_numbers = #tpu.dot_dimension_numbers<[1], [0], [0], [1], [0, 0, 1, 1], [], []>} : vector<48x16xf32>, vector<16x8xf32>, vector<48x8xf32> -> vector<48x8xf32>
    %c0_39 = arith.constant 0 : index
    %c0_40 = arith.constant 0 : index
    %c0_41 = arith.constant 0 : index
    %48 = vector.load %arg13[%c0_39, %c0_40, %c0_41] : memref<1x48x1xf32, #tpu.memory_space<vmem>>, vector<1x48x1xf32>
    %49 = vector.shape_cast %48 : vector<1x48x1xf32> to vector<48x1xf32>
    %50 = vector.broadcast %49 : vector<48x1xf32> to vector<48x8xf32>
    %51 = arith.addf %47, %50 : vector<48x8xf32>
    %52 = vector.extract_strided_slice %44 {offsets = [0, 0], sizes = [16, 8], strides = [1, 1]} : vector<48x8xf32> to vector<16x8xf32>
    %53 = vector.extract_strided_slice %51 {offsets = [0, 0], sizes = [16, 8], strides = [1, 1]} : vector<48x8xf32> to vector<16x8xf32>
    %54 = arith.addf %52, %53 : vector<16x8xf32>
    %55 = arith.negf %54 : vector<16x8xf32>
    %56 = math.exp %55 : vector<16x8xf32>
    %cst_42 = arith.constant 1.000000e+00 : f32
    %57 = vector.broadcast %cst_42 : f32 to vector<16x8xf32>
    %58 = arith.addf %57, %56 : vector<16x8xf32>
    %59 = arith.divf %57, %58 : vector<16x8xf32>
    %60 = vector.extract_strided_slice %44 {offsets = [16, 0], sizes = [16, 8], strides = [1, 1]} : vector<48x8xf32> to vector<16x8xf32>
    %61 = vector.extract_strided_slice %51 {offsets = [16, 0], sizes = [16, 8], strides = [1, 1]} : vector<48x8xf32> to vector<16x8xf32>
    %62 = arith.addf %60, %61 : vector<16x8xf32>
    %63 = arith.negf %62 : vector<16x8xf32>
    %64 = math.exp %63 : vector<16x8xf32>
    %cst_43 = arith.constant 1.000000e+00 : f32
    %65 = vector.broadcast %cst_43 : f32 to vector<16x8xf32>
    %66 = arith.addf %65, %64 : vector<16x8xf32>
    %67 = arith.divf %65, %66 : vector<16x8xf32>
    %68 = vector.extract_strided_slice %44 {offsets = [32, 0], sizes = [16, 8], strides = [1, 1]} : vector<48x8xf32> to vector<16x8xf32>
    %69 = vector.extract_strided_slice %51 {offsets = [32, 0], sizes = [16, 8], strides = [1, 1]} : vector<48x8xf32> to vector<16x8xf32>
    %70 = arith.mulf %59, %69 : vector<16x8xf32>
    %71 = arith.addf %68, %70 : vector<16x8xf32>
    %72 = math.tanh %71 : vector<16x8xf32>
    %cst_44 = arith.constant 1.000000e+00 : f32
    %73 = vector.broadcast %cst_44 : f32 to vector<16x8xf32>
    %74 = arith.subf %73, %67 : vector<16x8xf32>
    %75 = arith.mulf %74, %72 : vector<16x8xf32>
    %76 = arith.mulf %67, %3 : vector<16x8xf32>
    %77 = arith.addf %75, %76 : vector<16x8xf32>
    %c0_45 = arith.constant 0 : index
    %c0_46 = arith.constant 0 : index
    %78 = vector.load %arg19[%c0_45, %c0_46] : memref<16x8xf32, #tpu.memory_space<vmem>>, vector<16x8xf32>
    tpu.vector_store %arg19[%c0_45, %c0_46], %77 {strides = array<i32>} : memref<16x8xf32, #tpu.memory_space<vmem>>, vector<16x8xf32>,
    %c1_i32 = arith.constant 1 : i32
    %79 = arith.cmpi eq, %arg0, %c1_i32 : i32
    %80 = arith.extui %79 : i1 to i32
    %c0_i32_47 = arith.constant 0 : i32
    %81 = arith.cmpi ne, %80, %c0_i32_47 : i32
    scf.if %81 {
      %c0_48 = arith.constant 0 : index
      %c0_49 = arith.constant 0 : index
      %82 = vector.load %arg14[%c0_48, %c0_49] : memref<64x16xf32, #tpu.memory_space<vmem>>, vector<64x16xf32>
      %cst_50 = arith.constant dense<0.000000e+00> : vector<64x8xf32>
      %83 = tpu.matmul %82, %77, %cst_50 {dimension_numbers = #tpu.dot_dimension_numbers<[1], [0], [0], [1], [0, 0, 1, 1], [], []>} : vector<64x16xf32>, vector<16x8xf32>, vector<64x8xf32> -> vector<64x8xf32>
      %c0_51 = arith.constant 0 : index
      %c0_52 = arith.constant 0 : index
      %84 = vector.load %arg15[%c0_51, %c0_52] : memref<64x1xf32, #tpu.memory_space<vmem>>, vector<64x1xf32>
      %85 = vector.broadcast %84 : vector<64x1xf32> to vector<64x8xf32>
      %86 = arith.addf %83, %85 : vector<64x8xf32>
      %c0_53 = arith.constant 0 : index
      %c0_54 = arith.constant 0 : index
      %87 = vector.load %arg16[%c0_53, %c0_54] : memref<2x16xf32, #tpu.memory_space<vmem>>, vector<2x16xf32>
      %cst_55 = arith.constant dense<0.000000e+00> : vector<2x8xf32>
      %88 = tpu.matmul %87, %77, %cst_55 {dimension_numbers = #tpu.dot_dimension_numbers<[1], [0], [0], [1], [0, 0, 1, 1], [], []>} : vector<2x16xf32>, vector<16x8xf32>, vector<2x8xf32> -> vector<2x8xf32>
      %c0_56 = arith.constant 0 : index
      %c0_57 = arith.constant 0 : index
      %89 = vector.load %arg17[%c0_56, %c0_57] : memref<2x1xf32, #tpu.memory_space<vmem>>, vector<2x1xf32>
      %90 = vector.broadcast %89 : vector<2x1xf32> to vector<2x8xf32>
      %91 = arith.addf %88, %90 : vector<2x8xf32>
      %92 = arith.negf %91 : vector<2x8xf32>
      %93 = math.exp %92 : vector<2x8xf32>
      %cst_58 = arith.constant 1.000000e+00 : f32
      %94 = vector.broadcast %cst_58 : f32 to vector<2x8xf32>
      %95 = arith.addf %94, %93 : vector<2x8xf32>
      %96 = arith.divf %94, %95 : vector<2x8xf32>
      %97 = vector.extract_strided_slice %86 {offsets = [0, 0], sizes = [32, 8], strides = [1, 1]} : vector<64x8xf32> to vector<32x8xf32>
      %98 = vector.extract_strided_slice %96 {offsets = [0, 0], sizes = [1, 8], strides = [1, 1]} : vector<2x8xf32> to vector<1x8xf32>
      %99 = vector.broadcast %98 : vector<1x8xf32> to vector<32x8xf32>
      %100 = arith.mulf %97, %99 : vector<32x8xf32>
      %101 = vector.extract_strided_slice %86 {offsets = [32, 0], sizes = [32, 8], strides = [1, 1]} : vector<64x8xf32> to vector<32x8xf32>
      %102 = vector.extract_strided_slice %96 {offsets = [1, 0], sizes = [1, 8], strides = [1, 1]} : vector<2x8xf32> to vector<1x8xf32>
      %103 = vector.broadcast %102 : vector<1x8xf32> to vector<32x8xf32>
      %104 = arith.mulf %101, %103 : vector<32x8xf32>
      %105 = tpu.concatenate %100, %104 in 0 : vector<32x8xf32>, vector<32x8xf32> -> vector<64x8xf32>
      %c0_59 = arith.constant 0 : index
      %c0_60 = arith.constant 0 : index
      %106 = vector.load %arg3[%c0_59, %c0_60] : memref<2x8xbf16, #tpu.memory_space<vmem>>, vector<2x8xbf16>
      %107 = arith.extf %106 : vector<2x8xbf16> to vector<2x8xf32>
      %cst_61 = arith.constant dense<0.000000e+00> : vector<2x64xf32>
      %108 = tpu.matmul %107, %105, %cst_61 {dimension_numbers = #tpu.dot_dimension_numbers<[1], [1], [0], [0], [0, 0, 1, 0], [], []>} : vector<2x8xf32>, vector<64x8xf32>, vector<2x64xf32> -> vector<2x64xf32>
      %c0_62 = arith.constant 0 : index
      %c0_63 = arith.constant 0 : index
      %109 = vector.load %arg18[%c0_62, %c0_63] : memref<2x64xf32, #tpu.memory_space<vmem>>, vector<2x64xf32>
      tpu.vector_store %arg18[%c0_62, %c0_63], %108 {strides = array<i32>} : memref<2x64xf32, #tpu.memory_space<vmem>>, vector<2x64xf32>,
    } else {
    }
    return
  }
  func.func @transform_0(%arg0: i32) -> (i32, i32) {
    %c0_i32 = arith.constant 0 : i32
    %c0_i32_0 = arith.constant 0 : i32
    %c0_i32_1 = arith.constant 0 : i32
    return %c0_i32, %c0_i32_0 : i32, i32
  }
  func.func @transform_1(%arg0: i32) -> (i32, i32) {
    %c0_i32 = arith.constant 0 : i32
    %c0_i32_0 = arith.constant 0 : i32
    %c0_i32_1 = arith.constant 0 : i32
    return %c0_i32, %c0_i32_0 : i32, i32
  }
  func.func @transform_2(%arg0: i32) -> (i32, i32) {
    %c0_i32 = arith.constant 0 : i32
    %c0_i32_0 = arith.constant 0 : i32
    %c0_i32_1 = arith.constant 0 : i32
    return %c0_i32, %c0_i32_0 : i32, i32
  }
  func.func @transform_3(%arg0: i32) -> (i32, i32, i32) {
    %c0_i32 = arith.constant 0 : i32
    %c0_i32_0 = arith.constant 0 : i32
    %c0_i32_1 = arith.constant 0 : i32
    return %arg0, %c0_i32, %c0_i32_0 : i32, i32, i32
  }
  func.func @transform_4(%arg0: i32) -> (i32, i32, i32) {
    %c0_i32 = arith.constant 0 : i32
    %c0_i32_0 = arith.constant 0 : i32
    %c0_i32_1 = arith.constant 0 : i32
    return %arg0, %c0_i32, %c0_i32_0 : i32, i32, i32
  }
  func.func @transform_5(%arg0: i32) -> (i32, i32, i32) {
    %c0_i32 = arith.constant 0 : i32
    %c0_i32_0 = arith.constant 0 : i32
    %c0_i32_1 = arith.constant 0 : i32
    return %arg0, %c0_i32, %c0_i32_0 : i32, i32, i32
  }
  func.func @transform_6(%arg0: i32) -> (i32, i32, i32) {
    %c0_i32 = arith.constant 0 : i32
    %c0_i32_0 = arith.constant 0 : i32
    %c0_i32_1 = arith.constant 0 : i32
    return %arg0, %c0_i32, %c0_i32_0 : i32, i32, i32
  }
  func.func @transform_7(%arg0: i32) -> (i32, i32, i32) {
    %c0_i32 = arith.constant 0 : i32
    %c0_i32_0 = arith.constant 0 : i32
    %c0_i32_1 = arith.constant 0 : i32
    return %arg0, %c0_i32, %c0_i32_0 : i32, i32, i32
  }
  func.func @transform_8(%arg0: i32) -> (i32, i32, i32) {
    %c0_i32 = arith.constant 0 : i32
    %c0_i32_0 = arith.constant 0 : i32
    %c0_i32_1 = arith.constant 0 : i32
    return %arg0, %c0_i32, %c0_i32_0 : i32, i32, i32
  }
  func.func @transform_9(%arg0: i32) -> (i32, i32, i32) {
    %c0_i32 = arith.constant 0 : i32
    %c0_i32_0 = arith.constant 0 : i32
    %c0_i32_1 = arith.constant 0 : i32
    return %arg0, %c0_i32, %c0_i32_0 : i32, i32, i32
  }
  func.func @transform_10(%arg0: i32) -> (i32, i32, i32) {
    %c0_i32 = arith.constant 0 : i32
    %c0_i32_0 = arith.constant 0 : i32
    %c0_i32_1 = arith.constant 0 : i32
    return %arg0, %c0_i32, %c0_i32_0 : i32, i32, i32
  }
  func.func @transform_11(%arg0: i32) -> (i32, i32, i32) {
    %c0_i32 = arith.constant 0 : i32
    %c0_i32_0 = arith.constant 0 : i32
    %c0_i32_1 = arith.constant 0 : i32
    return %arg0, %c0_i32, %c0_i32_0 : i32, i32, i32
  }
  func.func @transform_12(%arg0: i32) -> (i32, i32, i32) {
    %c0_i32 = arith.constant 0 : i32
    %c0_i32_0 = arith.constant 0 : i32
    %c0_i32_1 = arith.constant 0 : i32
    return %arg0, %c0_i32, %c0_i32_0 : i32, i32, i32
  }
  func.func @transform_13(%arg0: i32) -> (i32, i32) {
    %c0_i32 = arith.constant 0 : i32
    %c0_i32_0 = arith.constant 0 : i32
    %c0_i32_1 = arith.constant 0 : i32
    return %c0_i32, %c0_i32_0 : i32, i32
  }
  func.func @transform_14(%arg0: i32) -> (i32, i32) {
    %c0_i32 = arith.constant 0 : i32
    %c0_i32_0 = arith.constant 0 : i32
    %c0_i32_1 = arith.constant 0 : i32
    return %c0_i32, %c0_i32_0 : i32, i32
  }
  func.func @transform_15(%arg0: i32) -> (i32, i32) {
    %c0_i32 = arith.constant 0 : i32
    %c0_i32_0 = arith.constant 0 : i32
    %c0_i32_1 = arith.constant 0 : i32
    return %c0_i32, %c0_i32_0 : i32, i32
  }
  func.func @transform_16(%arg0: i32) -> (i32, i32) {
    %c0_i32 = arith.constant 0 : i32
    %c0_i32_0 = arith.constant 0 : i32
    %c0_i32_1 = arith.constant 0 : i32
    return %c0_i32, %c0_i32_0 : i32, i32
  }
  func.func @transform_17(%arg0: i32) -> (i32, i32) {
    %c0_i32 = arith.constant 0 : i32
    %c0_i32_0 = arith.constant 0 : i32
    %c0_i32_1 = arith.constant 0 : i32
    return %c0_i32, %c0_i32_0 : i32, i32
  }
}

</mosaic_0001>

<llo_original>
// kernel: tpu_custom_call.1
$region0: #{tpu_custom_call.1}
  #allocation0 [shape = 'u32[]', space=smem, size = 0x4, offset = 0x4, fixed_abs, tag = 'smem constant byte address 0x4 - core index']
  #allocation1 [shape = 'u32[144,128]{1,0:T(1,128)}', space=vmem, size = 0x12000, scoped, tag = 'internal scratch']
  #allocation2 [shape = 'f32[16,8]{1,0:T(8,128)}', space=vmem, size = 0x2000, scoped, tag = 'scratch operand']
  %s0 = inlined_call_operand.vmem [shape: f32[16,8], index: 0, kind: input, shape index: {}]
  %s1 = inlined_call_operand.vmem [shape: bf16[8,16], index: 1, kind: input, shape index: {}]
  %s2 = inlined_call_operand.vmem [shape: bf16[2,8], index: 2, kind: input, shape index: {}]
  %s3 = inlined_call_operand.vmem [shape: f32[2,32,16], index: 3, kind: input, shape index: {}]
  %s4 = inlined_call_operand.vmem [shape: f32[2,32,16], index: 4, kind: input, shape index: {}]
  %s5 = inlined_call_operand.vmem [shape: f32[2,32,1], index: 5, kind: input, shape index: {}]
  %s6 = inlined_call_operand.vmem [shape: f32[2,32,16], index: 6, kind: input, shape index: {}]
  %s7 = inlined_call_operand.vmem [shape: f32[2,32,16], index: 7, kind: input, shape index: {}]
  %s8 = inlined_call_operand.vmem [shape: f32[2,32,1], index: 8, kind: input, shape index: {}]
  %s9 = inlined_call_operand.vmem [shape: f32[2,48,32], index: 9, kind: input, shape index: {}]
  %s10 = inlined_call_operand.vmem [shape: f32[2,48,1], index: 10, kind: input, shape index: {}]
  %s11 = inlined_call_operand.vmem [shape: f32[2,48,16], index: 11, kind: input, shape index: {}]
  %s12 = inlined_call_operand.vmem [shape: f32[2,48,1], index: 12, kind: input, shape index: {}]
  %s13 = inlined_call_operand.vmem [shape: f32[64,16], index: 13, kind: input, shape index: {}]
  %s14 = inlined_call_operand.vmem [shape: f32[64,1], index: 14, kind: input, shape index: {}]
  %s15 = inlined_call_operand.vmem [shape: f32[2,16], index: 15, kind: input, shape index: {}]
  %s16 = inlined_call_operand.vmem [shape: f32[2,1], index: 16, kind: input, shape index: {}]
  %s17 = inlined_call_operand.hbm [shape: f32[2,64], index: 17, kind: output, shape index: {}]
  %s18 = sld [smem:[#allocation0]]
  $region109: #{tpu_custom_call.1} parent=0
    _
  %s20 = ssub.s32 1, %s18
  %s21 = scalar_select 0, %s20, %s18
  $region1: #{tpu_custom_call.1} parent=0
    #allocation3 [shape = 'u8[1024]{0}', space=vmem, size = 0x400, scoped, tag = 'output window, operand 0, single buffered']
    #allocation4 [shape = 's32[2]{0}', space=sflag, size = 0x8, scoped, tag = 'scoped memory for tpu_custom_call.1']
    %22 = vsyncpa [#allocation4], 0
    loop: start=0, step=1, limit=4
    $region2: #{tpu_custom_call.1} parent=1 // loop_pre_header
      _
    $region3: #{tpu_custom_call.1} parent=1 // loop_header
      %s24 = sphi 0, %s28
      %p25 = scmp.ge.s32.totalorder %s24, 4
      %s32 = sphi 0, %s32
      %s34 = sphi 0, %s32
      %s35 = sphi 0, %s34
      %s49 = sphi 0, %s35
      %s53 = sphi 0, %s53
      %s55 = sphi 0, %s53
      %s56 = sphi 0, %s55
      %s70 = sphi 0, %s56
      %s74 = sphi 0, %s74
      %s76 = sphi 0, %s74
      %s77 = sphi 0, %s76
      %s91 = sphi 0, %s77
      %s97 = sphi 0, %s99
      %s100 = sphi 0, %s97
      %s101 = sphi 0, %s100
      %s117 = sphi 0, %s101
      %s123 = sphi 0, %s125
      %s126 = sphi 0, %s123
      %s127 = sphi 0, %s126
      %s143 = sphi 0, %s127
      %s149 = sphi 0, %s151
      %s152 = sphi 0, %s149
      %s153 = sphi 0, %s152
      %s169 = sphi 0, %s153
      %s175 = sphi 0, %s177
      %s178 = sphi 0, %s175
      %s179 = sphi 0, %s178
      %s195 = sphi 0, %s179
      %s201 = sphi 0, %s203
      %s204 = sphi 0, %s201
      %s205 = sphi 0, %s204
      %s221 = sphi 0, %s205
      %s227 = sphi 0, %s229
      %s230 = sphi 0, %s227
      %s231 = sphi 0, %s230
      %s247 = sphi 0, %s231
      %s253 = sphi 0, %s255
      %s256 = sphi 0, %s253
      %s257 = sphi 0, %s256
      %s273 = sphi 0, %s257
      %s279 = sphi 0, %s281
      %s282 = sphi 0, %s279
      %s283 = sphi 0, %s282
      %s299 = sphi 0, %s283
      %s305 = sphi 0, %s307
      %s308 = sphi 0, %s305
      %s309 = sphi 0, %s308
      %s325 = sphi 0, %s309
      %s331 = sphi 0, %s333
      %s334 = sphi 0, %s331
      %s335 = sphi 0, %s334
      %s351 = sphi 0, %s335
      %s355 = sphi 0, %s355
      %s357 = sphi 0, %s355
      %s358 = sphi 0, %s357
      %s372 = sphi 0, %s358
      %s376 = sphi 0, %s376
      %s378 = sphi 0, %s376
      %s379 = sphi 0, %s378
      %s393 = sphi 0, %s379
      %s397 = sphi 0, %s397
      %s399 = sphi 0, %s397
      %s400 = sphi 0, %s399
      %s414 = sphi 0, %s400
      %s418 = sphi 0, %s418
      %s420 = sphi 0, %s418
      %s421 = sphi 0, %s420
      %s435 = sphi 0, %s421
      %s439 = sphi 0, %s439
      %s441 = sphi 0, %s439
      %s442 = sphi 0, %s441
      %s456 = sphi 0, %s442
    $region4: #{tpu_custom_call.1} parent=1 // loop_header_branch
      %27 = sbr.rel (%p25) target = $region8
    $region5: #{tpu_custom_call.1} parent=1 // loop_body
      %s29 = ssub.s32 %s24, 1
      %s30 = ssub.s32 %s24, 2
      %s31 = sadd.s32 %s24, 1
      %s33 = sadd.s32 %s32, 1
      %p36 = scmp.eq.s32.totalorder %s24, 1
      %p37 = scmp.ne.s32.totalorder %s32, %s34
      %p38 = scmp.eq.s32.totalorder %s24, 0
      %p39 = por %p37, %p38
      %p40 = scmp.ne.s32.totalorder %s32, %s34
      %p41 = scmp.eq.s32.totalorder %s29, 1
      %p42 = por %p40, %p41
      %p43 = scmp.ne.s32.totalorder %s34, %s35
      %p44 = scmp.eq.s32.totalorder %s29, 0
      %p45 = por %p43, %p44
      %p46 = scmp.ne.s32.totalorder %s34, %s35
      %p47 = scmp.eq.s32.totalorder %s30, 1
      %p48 = por %p46, %p47
      %p50 = scmp.ne.s32.totalorder %s35, %s49
      %p51 = scmp.eq.s32.totalorder %s30, 0
      %p52 = por %p50, %p51
      %s54 = sadd.s32 %s53, 1
      %p57 = scmp.eq.s32.totalorder %s24, 1
      %p58 = scmp.ne.s32.totalorder %s53, %s55
      %p59 = scmp.eq.s32.totalorder %s24, 0
      %p60 = por %p58, %p59
      %p61 = scmp.ne.s32.totalorder %s53, %s55
      %p62 = scmp.eq.s32.totalorder %s29, 1
      %p63 = por %p61, %p62
      %p64 = scmp.ne.s32.totalorder %s55, %s56
      %p65 = scmp.eq.s32.totalorder %s29, 0
      %p66 = por %p64, %p65
      %p67 = scmp.ne.s32.totalorder %s55, %s56
      %p68 = scmp.eq.s32.totalorder %s30, 1
      %p69 = por %p67, %p68
      %p71 = scmp.ne.s32.totalorder %s56, %s70
      %p72 = scmp.eq.s32.totalorder %s30, 0
      %p73 = por %p71, %p72
      %s75 = sadd.s32 %s74, 1
      %p78 = scmp.eq.s32.totalorder %s24, 1
      %p79 = scmp.ne.s32.totalorder %s74, %s76
      %p80 = scmp.eq.s32.totalorder %s24, 0
      %p81 = por %p79, %p80
      %p82 = scmp.ne.s32.totalorder %s74, %s76
      %p83 = scmp.eq.s32.totalorder %s29, 1
      %p84 = por %p82, %p83
      %p85 = scmp.ne.s32.totalorder %s76, %s77
      %p86 = scmp.eq.s32.totalorder %s29, 0
      %p87 = por %p85, %p86
      %p88 = scmp.ne.s32.totalorder %s76, %s77
      %p89 = scmp.eq.s32.totalorder %s30, 1
      %p90 = por %p88, %p89
      %p92 = scmp.ne.s32.totalorder %s77, %s91
      %p93 = scmp.eq.s32.totalorder %s30, 0
      %p94 = por %p92, %p93
      %s95 = ssub.s32 %s24, %s31
      %p96 = scmp.eq.s32.totalorder %s95, 0
      %s98 = sadd.s32 %s97, 1
      %s99 = scalar_select %p96, %s97, %s98
      %p102 = pneg %p96
      %p103 = scmp.eq.s32.totalorder %s24, 1
      %p104 = por %p102, %p103
      %p105 = scmp.ne.s32.totalorder %s97, %s100
      %p106 = scmp.eq.s32.totalorder %s24, 0
      %p107 = por %p105, %p106
      %p108 = scmp.ne.s32.totalorder %s97, %s100
      %p109 = scmp.eq.s32.totalorder %s29, 1
      %p110 = por %p108, %p109
      %p111 = scmp.ne.s32.totalorder %s100, %s101
      %p112 = scmp.eq.s32.totalorder %s29, 0
      %p113 = por %p111, %p112
      %p114 = scmp.ne.s32.totalorder %s100, %s101
      %p115 = scmp.eq.s32.totalorder %s30, 1
      %p116 = por %p114, %p115
      %p118 = scmp.ne.s32.totalorder %s101, %s117
      %p119 = scmp.eq.s32.totalorder %s30, 0
      %p120 = por %p118, %p119
      %s121 = ssub.s32 %s24, %s31
      %p122 = scmp.eq.s32.totalorder %s121, 0
      %s124 = sadd.s32 %s123, 1
      %s125 = scalar_select %p122, %s123, %s124
      %p128 = pneg %p122
      %p129 = scmp.eq.s32.totalorder %s24, 1
      %p130 = por %p128, %p129
      %p131 = scmp.ne.s32.totalorder %s123, %s126
      %p132 = scmp.eq.s32.totalorder %s24, 0
      %p133 = por %p131, %p132
      %p134 = scmp.ne.s32.totalorder %s123, %s126
      %p135 = scmp.eq.s32.totalorder %s29, 1
      %p136 = por %p134, %p135
      %p137 = scmp.ne.s32.totalorder %s126, %s127
      %p138 = scmp.eq.s32.totalorder %s29, 0
      %p139 = por %p137, %p138
      %p140 = scmp.ne.s32.totalorder %s126, %s127
      %p141 = scmp.eq.s32.totalorder %s30, 1
      %p142 = por %p140, %p141
      %p144 = scmp.ne.s32.totalorder %s127, %s143
      %p145 = scmp.eq.s32.totalorder %s30, 0
      %p146 = por %p144, %p145
      %s147 = ssub.s32 %s24, %s31
      %p148 = scmp.eq.s32.totalorder %s147, 0
      %s150 = sadd.s32 %s149, 1
      %s151 = scalar_select %p148, %s149, %s150
      %p154 = pneg %p148
      %p155 = scmp.eq.s32.totalorder %s24, 1
      %p156 = por %p154, %p155
      %p157 = scmp.ne.s32.totalorder %s149, %s152
      %p158 = scmp.eq.s32.totalorder %s24, 0
      %p159 = por %p157, %p158
      %p160 = scmp.ne.s32.totalorder %s149, %s152
      %p161 = scmp.eq.s32.totalorder %s29, 1
      %p162 = por %p160, %p161
      %p163 = scmp.ne.s32.totalorder %s152, %s153
      %p164 = scmp.eq.s32.totalorder %s29, 0
      %p165 = por %p163, %p164
      %p166 = scmp.ne.s32.totalorder %s152, %s153
      %p167 = scmp.eq.s32.totalorder %s30, 1
      %p168 = por %p166, %p167
      %p170 = scmp.ne.s32.totalorder %s153, %s169
      %p171 = scmp.eq.s32.totalorder %s30, 0
      %p172 = por %p170, %p171
      %s173 = ssub.s32 %s24, %s31
      %p174 = scmp.eq.s32.totalorder %s173, 0
      %s176 = sadd.s32 %s175, 1
      %s177 = scalar_select %p174, %s175, %s176
      %p180 = pneg %p174
      %p181 = scmp.eq.s32.totalorder %s24, 1
      %p182 = por %p180, %p181
      %p183 = scmp.ne.s32.totalorder %s175, %s178
      %p184 = scmp.eq.s32.totalorder %s24, 0
      %p185 = por %p183, %p184
      %p186 = scmp.ne.s32.totalorder %s175, %s178
      %p187 = scmp.eq.s32.totalorder %s29, 1
      %p188 = por %p186, %p187
      %p189 = scmp.ne.s32.totalorder %s178, %s179
      %p190 = scmp.eq.s32.totalorder %s29, 0
      %p191 = por %p189, %p190
      %p192 = scmp.ne.s32.totalorder %s178, %s179
      %p193 = scmp.eq.s32.totalorder %s30, 1
      %p194 = por %p192, %p193
      %p196 = scmp.ne.s32.totalorder %s179, %s195
      %p197 = scmp.eq.s32.totalorder %s30, 0
      %p198 = por %p196, %p197
      %s199 = ssub.s32 %s24, %s31
      %p200 = scmp.eq.s32.totalorder %s199, 0
      %s202 = sadd.s32 %s201, 1
      %s203 = scalar_select %p200, %s201, %s202
      %p206 = pneg %p200
      %p207 = scmp.eq.s32.totalorder %s24, 1
      %p208 = por %p206, %p207
      %p209 = scmp.ne.s32.totalorder %s201, %s204
      %p210 = scmp.eq.s32.totalorder %s24, 0
      %p211 = por %p209, %p210
      %p212 = scmp.ne.s32.totalorder %s201, %s204
      %p213 = scmp.eq.s32.totalorder %s29, 1
      %p214 = por %p212, %p213
      %p215 = scmp.ne.s32.totalorder %s204, %s205
      %p216 = scmp.eq.s32.totalorder %s29, 0
      %p217 = por %p215, %p216
      %p218 = scmp.ne.s32.totalorder %s204, %s205
      %p219 = scmp.eq.s32.totalorder %s30, 1
      %p220 = por %p218, %p219
      %p222 = scmp.ne.s32.totalorder %s205, %s221
      %p223 = scmp.eq.s32.totalorder %s30, 0
      %p224 = por %p222, %p223
      %s225 = ssub.s32 %s24, %s31
      %p226 = scmp.eq.s32.totalorder %s225, 0
      %s228 = sadd.s32 %s227, 1
      %s229 = scalar_select %p226, %s227, %s228
      %p232 = pneg %p226
      %p233 = scmp.eq.s32.totalorder %s24, 1
      %p234 = por %p232, %p233
      %p235 = scmp.ne.s32.totalorder %s227, %s230
      %p236 = scmp.eq.s32.totalorder %s24, 0
      %p237 = por %p235, %p236
      %p238 = scmp.ne.s32.totalorder %s227, %s230
      %p239 = scmp.eq.s32.totalorder %s29, 1
      %p240 = por %p238, %p239
      %p241 = scmp.ne.s32.totalorder %s230, %s231
      %p242 = scmp.eq.s32.totalorder %s29, 0
      %p243 = por %p241, %p242
      %p244 = scmp.ne.s32.totalorder %s230, %s231
      %p245 = scmp.eq.s32.totalorder %s30, 1
      %p246 = por %p244, %p245
      %p248 = scmp.ne.s32.totalorder %s231, %s247
      %p249 = scmp.eq.s32.totalorder %s30, 0
      %p250 = por %p248, %p249
      %s251 = ssub.s32 %s24, %s31
      %p252 = scmp.eq.s32.totalorder %s251, 0
      %s254 = sadd.s32 %s253, 1
      %s255 = scalar_select %p252, %s253, %s254
      %p258 = pneg %p252
      %p259 = scmp.eq.s32.totalorder %s24, 1
      %p260 = por %p258, %p259
      %p261 = scmp.ne.s32.totalorder %s253, %s256
      %p262 = scmp.eq.s32.totalorder %s24, 0
      %p263 = por %p261, %p262
      %p264 = scmp.ne.s32.totalorder %s253, %s256
      %p265 = scmp.eq.s32.totalorder %s29, 1
      %p266 = por %p264, %p265
      %p267 = scmp.ne.s32.totalorder %s256, %s257
      %p268 = scmp.eq.s32.totalorder %s29, 0
      %p269 = por %p267, %p268
      %p270 = scmp.ne.s32.totalorder %s256, %s257
      %p271 = scmp.eq.s32.totalorder %s30, 1
      %p272 = por %p270, %p271
      %p274 = scmp.ne.s32.totalorder %s257, %s273
      %p275 = scmp.eq.s32.totalorder %s30, 0
      %p276 = por %p274, %p275
      %s277 = ssub.s32 %s24, %s31
      %p278 = scmp.eq.s32.totalorder %s277, 0
      %s280 = sadd.s32 %s279, 1
      %s281 = scalar_select %p278, %s279, %s280
      %p284 = pneg %p278
      %p285 = scmp.eq.s32.totalorder %s24, 1
      %p286 = por %p284, %p285
      %p287 = scmp.ne.s32.totalorder %s279, %s282
      %p288 = scmp.eq.s32.totalorder %s24, 0
      %p289 = por %p287, %p288
      %p290 = scmp.ne.s32.totalorder %s279, %s282
      %p291 = scmp.eq.s32.totalorder %s29, 1
      %p292 = por %p290, %p291
      %p293 = scmp.ne.s32.totalorder %s282, %s283
      %p294 = scmp.eq.s32.totalorder %s29, 0
      %p295 = por %p293, %p294
      %p296 = scmp.ne.s32.totalorder %s282, %s283
      %p297 = scmp.eq.s32.totalorder %s30, 1
      %p298 = por %p296, %p297
      %p300 = scmp.ne.s32.totalorder %s283, %s299
      %p301 = scmp.eq.s32.totalorder %s30, 0
      %p302 = por %p300, %p301
      %s303 = ssub.s32 %s24, %s31
      %p304 = scmp.eq.s32.totalorder %s303, 0
      %s306 = sadd.s32 %s305, 1
      %s307 = scalar_select %p304, %s305, %s306
      %p310 = pneg %p304
      %p311 = scmp.eq.s32.totalorder %s24, 1
      %p312 = por %p310, %p311
      %p313 = scmp.ne.s32.totalorder %s305, %s308
      %p314 = scmp.eq.s32.totalorder %s24, 0
      %p315 = por %p313, %p314
      %p316 = scmp.ne.s32.totalorder %s305, %s308
      %p317 = scmp.eq.s32.totalorder %s29, 1
      %p318 = por %p316, %p317
      %p319 = scmp.ne.s32.totalorder %s308, %s309
      %p320 = scmp.eq.s32.totalorder %s29, 0
      %p321 = por %p319, %p320
      %p322 = scmp.ne.s32.totalorder %s308, %s309
      %p323 = scmp.eq.s32.totalorder %s30, 1
      %p324 = por %p322, %p323
      %p326 = scmp.ne.s32.totalorder %s309, %s325
      %p327 = scmp.eq.s32.totalorder %s30, 0
      %p328 = por %p326, %p327
      %s329 = ssub.s32 %s24, %s31
      %p330 = scmp.eq.s32.totalorder %s329, 0
      %s332 = sadd.s32 %s331, 1
      %s333 = scalar_select %p330, %s331, %s332
      %p336 = pneg %p330
      %p337 = scmp.eq.s32.totalorder %s24, 1
      %p338 = por %p336, %p337
      %p339 = scmp.ne.s32.totalorder %s331, %s334
      %p340 = scmp.eq.s32.totalorder %s24, 0
      %p341 = por %p339, %p340
      %p342 = scmp.ne.s32.totalorder %s331, %s334
      %p343 = scmp.eq.s32.totalorder %s29, 1
      %p344 = por %p342, %p343
      %p345 = scmp.ne.s32.totalorder %s334, %s335
      %p346 = scmp.eq.s32.totalorder %s29, 0
      %p347 = por %p345, %p346
      %p348 = scmp.ne.s32.totalorder %s334, %s335
      %p349 = scmp.eq.s32.totalorder %s30, 1
      %p350 = por %p348, %p349
      %p352 = scmp.ne.s32.totalorder %s335, %s351
      %p353 = scmp.eq.s32.totalorder %s30, 0
      %p354 = por %p352, %p353
      %s356 = sadd.s32 %s355, 1
      %p359 = scmp.eq.s32.totalorder %s24, 1
      %p360 = scmp.ne.s32.totalorder %s355, %s357
      %p361 = scmp.eq.s32.totalorder %s24, 0
      %p362 = por %p360, %p361
      %p363 = scmp.ne.s32.totalorder %s355, %s357
      %p364 = scmp.eq.s32.totalorder %s29, 1
      %p365 = por %p363, %p364
      %p366 = scmp.ne.s32.totalorder %s357, %s358
      %p367 = scmp.eq.s32.totalorder %s29, 0
      %p368 = por %p366, %p367
      %p369 = scmp.ne.s32.totalorder %s357, %s358
      %p370 = scmp.eq.s32.totalorder %s30, 1
      %p371 = por %p369, %p370
      %p373 = scmp.ne.s32.totalorder %s358, %s372
      %p374 = scmp.eq.s32.totalorder %s30, 0
      %p375 = por %p373, %p374
      %s377 = sadd.s32 %s376, 1
      %p380 = scmp.eq.s32.totalorder %s24, 1
      %p381 = scmp.ne.s32.totalorder %s376, %s378
      %p382 = scmp.eq.s32.totalorder %s24, 0
      %p383 = por %p381, %p382
      %p384 = scmp.ne.s32.totalorder %s376, %s378
      %p385 = scmp.eq.s32.totalorder %s29, 1
      %p386 = por %p384, %p385
      %p387 = scmp.ne.s32.totalorder %s378, %s379
      %p388 = scmp.eq.s32.totalorder %s29, 0
      %p389 = por %p387, %p388
      %p390 = scmp.ne.s32.totalorder %s378, %s379
      %p391 = scmp.eq.s32.totalorder %s30, 1
      %p392 = por %p390, %p391
      %p394 = scmp.ne.s32.totalorder %s379, %s393
      %p395 = scmp.eq.s32.totalorder %s30, 0
      %p396 = por %p394, %p395
      %s398 = sadd.s32 %s397, 1
      %p401 = scmp.eq.s32.totalorder %s24, 1
      %p402 = scmp.ne.s32.totalorder %s397, %s399
      %p403 = scmp.eq.s32.totalorder %s24, 0
      %p404 = por %p402, %p403
      %p405 = scmp.ne.s32.totalorder %s397, %s399
      %p406 = scmp.eq.s32.totalorder %s29, 1
      %p407 = por %p405, %p406
      %p408 = scmp.ne.s32.totalorder %s399, %s400
      %p409 = scmp.eq.s32.totalorder %s29, 0
      %p410 = por %p408, %p409
      %p411 = scmp.ne.s32.totalorder %s399, %s400
      %p412 = scmp.eq.s32.totalorder %s30, 1
      %p413 = por %p411, %p412
      %p415 = scmp.ne.s32.totalorder %s400, %s414
      %p416 = scmp.eq.s32.totalorder %s30, 0
      %p417 = por %p415, %p416
      %s419 = sadd.s32 %s418, 1
      %p422 = scmp.eq.s32.totalorder %s24, 1
      %p423 = scmp.ne.s32.totalorder %s418, %s420
      %p424 = scmp.eq.s32.totalorder %s24, 0
      %p425 = por %p423, %p424
      %p426 = scmp.ne.s32.totalorder %s418, %s420
      %p427 = scmp.eq.s32.totalorder %s29, 1
      %p428 = por %p426, %p427
      %p429 = scmp.ne.s32.totalorder %s420, %s421
      %p430 = scmp.eq.s32.totalorder %s29, 0
      %p431 = por %p429, %p430
      %p432 = scmp.ne.s32.totalorder %s420, %s421
      %p433 = scmp.eq.s32.totalorder %s30, 1
      %p434 = por %p432, %p433
      %p436 = scmp.ne.s32.totalorder %s421, %s435
      %p437 = scmp.eq.s32.totalorder %s30, 0
      %p438 = por %p436, %p437
      %s440 = sadd.s32 %s439, 1
      %p443 = scmp.eq.s32.totalorder %s24, 1
      %p444 = scmp.ne.s32.totalorder %s439, %s441
      %p445 = scmp.eq.s32.totalorder %s24, 0
      %p446 = por %p444, %p445
      %p447 = scmp.ne.s32.totalorder %s439, %s441
      %p448 = scmp.eq.s32.totalorder %s29, 1
      %p449 = por %p447, %p448
      %p450 = scmp.ne.s32.totalorder %s441, %s442
      %p451 = scmp.eq.s32.totalorder %s29, 0
      %p452 = por %p450, %p451
      %p453 = scmp.ne.s32.totalorder %s441, %s442
      %p454 = scmp.eq.s32.totalorder %s30, 1
      %p455 = por %p453, %p454
      %p457 = scmp.ne.s32.totalorder %s442, %s456
      %p458 = scmp.eq.s32.totalorder %s30, 0
      %p459 = por %p457, %p458
      %p460 = scmp.le.s32.totalorder 1, %s24
      %p461 = scmp.lt.s32.totalorder %s24, 3
      %p462 = pnand %p460, %p461
      %p463 = pneg %p462
      // Predicated region
      $region9: #{tpu_custom_call.1} parent=5 // pred_check
        _
      $region10: #{tpu_custom_call.1} parent=5 // pred_check_branch
        %465 = sbr.rel (%p462) target = $region12
      $region11: #{tpu_custom_call.1} parent=5 // pred_region
        %s466 = ssub.s32 %s24, 1
        // Predicated region
        $region13: #{tpu_custom_call.1} parent=11 // pred_check
          %p467 = pneg %p45
        $region14: #{tpu_custom_call.1} parent=11 // pred_check_branch
          %469 = sbr.rel (%p467) target = $region16
        $region15: #{tpu_custom_call.1} parent=11 // pred_region
          _
        $region16: #{tpu_custom_call.1} parent=11 // pred_fallthru
          _
        // Predicated region
        $region17: #{tpu_custom_call.1} parent=11 // pred_check
          %p470 = pneg %p66
        $region18: #{tpu_custom_call.1} parent=11 // pred_check_branch
          %472 = sbr.rel (%p470) target = $region20
        $region19: #{tpu_custom_call.1} parent=11 // pred_region
          _
        $region20: #{tpu_custom_call.1} parent=11 // pred_fallthru
          _
        // Predicated region
        $region21: #{tpu_custom_call.1} parent=11 // pred_check
          %p473 = pneg %p87
        $region22: #{tpu_custom_call.1} parent=11 // pred_check_branch
          %475 = sbr.rel (%p473) target = $region24
        $region23: #{tpu_custom_call.1} parent=11 // pred_region
          _
        $region24: #{tpu_custom_call.1} parent=11 // pred_fallthru
          _
        // Predicated region
        $region25: #{tpu_custom_call.1} parent=11 // pred_check
          %p476 = pneg %p368
        $region26: #{tpu_custom_call.1} parent=11 // pred_check_branch
          %478 = sbr.rel (%p476) target = $region28
        $region27: #{tpu_custom_call.1} parent=11 // pred_region
          _
        $region28: #{tpu_custom_call.1} parent=11 // pred_fallthru
          _
        // Predicated region
        $region29: #{tpu_custom_call.1} parent=11 // pred_check
          %p479 = pneg %p389
        $region30: #{tpu_custom_call.1} parent=11 // pred_check_branch
          %481 = sbr.rel (%p479) target = $region32
        $region31: #{tpu_custom_call.1} parent=11 // pred_region
          _
        $region32: #{tpu_custom_call.1} parent=11 // pred_fallthru
          _
        // Predicated region
        $region33: #{tpu_custom_call.1} parent=11 // pred_check
          %p482 = pneg %p410
        $region34: #{tpu_custom_call.1} parent=11 // pred_check_branch
          %484 = sbr.rel (%p482) target = $region36
        $region35: #{tpu_custom_call.1} parent=11 // pred_region
          _
        $region36: #{tpu_custom_call.1} parent=11 // pred_fallthru
          _
        // Predicated region
        $region37: #{tpu_custom_call.1} parent=11 // pred_check
          %p485 = pneg %p431
        $region38: #{tpu_custom_call.1} parent=11 // pred_check_branch
          %487 = sbr.rel (%p485) target = $region40
        $region39: #{tpu_custom_call.1} parent=11 // pred_region
          _
        $region40: #{tpu_custom_call.1} parent=11 // pred_fallthru
          _
      $region12: #{tpu_custom_call.1} parent=5 // pred_fallthru
        _
      %p488 = scmp.lt.s32.totalorder %s24, 2
      // Predicated region
      $region41: #{tpu_custom_call.1} parent=5 // pred_check
        %p489 = pneg %p488
      $region42: #{tpu_custom_call.1} parent=5 // pred_check_branch
        %491 = sbr.rel (%p489) target = $region44
      $region43: #{tpu_custom_call.1} parent=5 // pred_region
        // Predicated region
        $region45: #{tpu_custom_call.1} parent=43 // pred_check
          %p492 = pneg %p107
        $region46: #{tpu_custom_call.1} parent=43 // pred_check_branch
          %494 = sbr.rel (%p492) target = $region48
        $region47: #{tpu_custom_call.1} parent=43 // pred_region
          %p495 = scmp.lt.s32.totalorder %s24, 1
          %s496 = scalar_select %p495, %s24, 1
          %s497 = smul.addr %s496, 4
          %s498 = smul.addr %s497, 8
          %s499 = scalar_lea.vmem %s3, %s498
        $region48: #{tpu_custom_call.1} parent=43 // pred_fallthru
          _
        // Predicated region
        $region49: #{tpu_custom_call.1} parent=43 // pred_check
          %p500 = pneg %p133
        $region50: #{tpu_custom_call.1} parent=43 // pred_check_branch
          %502 = sbr.rel (%p500) target = $region52
        $region51: #{tpu_custom_call.1} parent=43 // pred_region
          %p503 = scmp.lt.s32.totalorder %s24, 1
          %s504 = scalar_select %p503, %s24, 1
          %s505 = smul.addr %s504, 4
          %s506 = smul.addr %s505, 8
          %s507 = scalar_lea.vmem %s4, %s506
        $region52: #{tpu_custom_call.1} parent=43 // pred_fallthru
          _
        // Predicated region
        $region53: #{tpu_custom_call.1} parent=43 // pred_check
          %p508 = pneg %p159
        $region54: #{tpu_custom_call.1} parent=43 // pred_check_branch
          %510 = sbr.rel (%p508) target = $region56
        $region55: #{tpu_custom_call.1} parent=43 // pred_region
          %p511 = scmp.lt.s32.totalorder %s24, 1
          %s512 = scalar_select %p511, %s24, 1
          %s513 = smul.addr %s512, 4
          %s514 = smul.addr %s513, 8
          %s515 = scalar_lea.vmem %s5, %s514
        $region56: #{tpu_custom_call.1} parent=43 // pred_fallthru
          _
        // Predicated region
        $region57: #{tpu_custom_call.1} parent=43 // pred_check
          %p516 = pneg %p185
        $region58: #{tpu_custom_call.1} parent=43 // pred_check_branch
          %518 = sbr.rel (%p516) target = $region60
        $region59: #{tpu_custom_call.1} parent=43 // pred_region
          %p519 = scmp.lt.s32.totalorder %s24, 1
          %s520 = scalar_select %p519, %s24, 1
          %s521 = smul.addr %s520, 4
          %s522 = smul.addr %s521, 8
          %s523 = scalar_lea.vmem %s6, %s522
        $region60: #{tpu_custom_call.1} parent=43 // pred_fallthru
          _
        // Predicated region
        $region61: #{tpu_custom_call.1} parent=43 // pred_check
          %p524 = pneg %p211
        $region62: #{tpu_custom_call.1} parent=43 // pred_check_branch
          %526 = sbr.rel (%p524) target = $region64
        $region63: #{tpu_custom_call.1} parent=43 // pred_region
          %p527 = scmp.lt.s32.totalorder %s24, 1
          %s528 = scalar_select %p527, %s24, 1
          %s529 = smul.addr %s528, 4
          %s530 = smul.addr %s529, 8
          %s531 = scalar_lea.vmem %s7, %s530
        $region64: #{tpu_custom_call.1} parent=43 // pred_fallthru
          _
        // Predicated region
        $region65: #{tpu_custom_call.1} parent=43 // pred_check
          %p532 = pneg %p237
        $region66: #{tpu_custom_call.1} parent=43 // pred_check_branch
          %534 = sbr.rel (%p532) target = $region68
        $region67: #{tpu_custom_call.1} parent=43 // pred_region
          %p535 = scmp.lt.s32.totalorder %s24, 1
          %s536 = scalar_select %p535, %s24, 1
          %s537 = smul.addr %s536, 4
          %s538 = smul.addr %s537, 8
          %s539 = scalar_lea.vmem %s8, %s538
        $region68: #{tpu_custom_call.1} parent=43 // pred_fallthru
          _
        // Predicated region
        $region69: #{tpu_custom_call.1} parent=43 // pred_check
          %p540 = pneg %p263
        $region70: #{tpu_custom_call.1} parent=43 // pred_check_branch
          %542 = sbr.rel (%p540) target = $region72
        $region71: #{tpu_custom_call.1} parent=43 // pred_region
          %p543 = scmp.lt.s32.totalorder %s24, 1
          %s544 = scalar_select %p543, %s24, 1
          %s545 = smul.addr %s544, 6
          %s546 = smul.addr %s545, 8
          %s547 = scalar_lea.vmem %s9, %s546
        $region72: #{tpu_custom_call.1} parent=43 // pred_fallthru
          _
        // Predicated region
        $region73: #{tpu_custom_call.1} parent=43 // pred_check
          %p548 = pneg %p289
        $region74: #{tpu_custom_call.1} parent=43 // pred_check_branch
          %550 = sbr.rel (%p548) target = $region76
        $region75: #{tpu_custom_call.1} parent=43 // pred_region
          %p551 = scmp.lt.s32.totalorder %s24, 1
          %s552 = scalar_select %p551, %s24, 1
          %s553 = smul.addr %s552, 6
          %s554 = smul.addr %s553, 8
          %s555 = scalar_lea.vmem %s10, %s554
        $region76: #{tpu_custom_call.1} parent=43 // pred_fallthru
          _
        // Predicated region
        $region77: #{tpu_custom_call.1} parent=43 // pred_check
          %p556 = pneg %p315
        $region78: #{tpu_custom_call.1} parent=43 // pred_check_branch
          %558 = sbr.rel (%p556) target = $region80
        $region79: #{tpu_custom_call.1} parent=43 // pred_region
          %p559 = scmp.lt.s32.totalorder %s24, 1
          %s560 = scalar_select %p559, %s24, 1
          %s561 = smul.addr %s560, 6
          %s562 = smul.addr %s561, 8
          %s563 = scalar_lea.vmem %s11, %s562
        $region80: #{tpu_custom_call.1} parent=43 // pred_fallthru
          _
        // Predicated region
        $region81: #{tpu_custom_call.1} parent=43 // pred_check
          %p564 = pneg %p341
        $region82: #{tpu_custom_call.1} parent=43 // pred_check_branch
          %566 = sbr.rel (%p564) target = $region84
        $region83: #{tpu_custom_call.1} parent=43 // pred_region
          %p567 = scmp.lt.s32.totalorder %s24, 1
          %s568 = scalar_select %p567, %s24, 1
          %s569 = smul.addr %s568, 6
          %s570 = smul.addr %s569, 8
          %s571 = scalar_lea.vmem %s12, %s570
        $region84: #{tpu_custom_call.1} parent=43 // pred_fallthru
          _
      $region44: #{tpu_custom_call.1} parent=5 // pred_fallthru
        _
      %p572 = scmp.le.s32.totalorder 1, %s24
      %p573 = scmp.lt.s32.totalorder %s24, 3
      %p574 = pnand %p572, %p573
      %p575 = pneg %p574
      // Predicated region
      $region85: #{tpu_custom_call.1} parent=5 // pred_check
        _
      $region86: #{tpu_custom_call.1} parent=5 // pred_check_branch
        %577 = sbr.rel (%p574) target = $region88
      $region87: #{tpu_custom_call.1} parent=5 // pred_region
        %s578 = ssub.s32 %s24, 1
        %p579 = pneg %p45
        %p580 = pneg %p42
        %p581 = pneg %p66
        %p582 = pneg %p63
        %p583 = pneg %p87
        %p584 = pneg %p84
        %p585 = scmp.lt.s32.totalorder %s29, 1
        %s586 = scalar_select %p585, %s29, 1
        %s587 = smul.addr %s586, 4
        %s588 = smul.addr %s587, 8
        %s589 = scalar_lea.vmem %s3, %s588
        %p590 = pneg %p113
        %p591 = pneg %p110
        %p592 = scmp.lt.s32.totalorder %s29, 1
        %s593 = scalar_select %p592, %s29, 1
        %s594 = smul.addr %s593, 4
        %s595 = smul.addr %s594, 8
        %s596 = scalar_lea.vmem %s4, %s595
        %p597 = pneg %p139
        %p598 = pneg %p136
        %p599 = scmp.lt.s32.totalorder %s29, 1
        %s600 = scalar_select %p599, %s29, 1
        %s601 = smul.addr %s600, 4
        %s602 = smul.addr %s601, 8
        %s603 = scalar_lea.vmem %s5, %s602
        %p604 = pneg %p165
        %p605 = pneg %p162
        %p606 = scmp.lt.s32.totalorder %s29, 1
        %s607 = scalar_select %p606, %s29, 1
        %s608 = smul.addr %s607, 4
        %s609 = smul.addr %s608, 8
        %s610 = scalar_lea.vmem %s6, %s609
        %p611 = pneg %p191
        %p612 = pneg %p188
        %p613 = scmp.lt.s32.totalorder %s29, 1
        %s614 = scalar_select %p613, %s29, 1
        %s615 = smul.addr %s614, 4
        %s616 = smul.addr %s615, 8
        %s617 = scalar_lea.vmem %s7, %s616
        %p618 = pneg %p217
        %p619 = pneg %p214
        %p620 = scmp.lt.s32.totalorder %s29, 1
        %s621 = scalar_select %p620, %s29, 1
        %s622 = smul.addr %s621, 4
        %s623 = smul.addr %s622, 8
        %s624 = scalar_lea.vmem %s8, %s623
        %p625 = pneg %p243
        %p626 = pneg %p240
        %p627 = scmp.lt.s32.totalorder %s29, 1
        %s628 = scalar_select %p627, %s29, 1
        %s629 = smul.addr %s628, 6
        %s630 = smul.addr %s629, 8
        %s631 = scalar_lea.vmem %s9, %s630
        %p632 = pneg %p269
        %p633 = pneg %p266
        %p634 = scmp.lt.s32.totalorder %s29, 1
        %s635 = scalar_select %p634, %s29, 1
        %s636 = smul.addr %s635, 6
        %s637 = smul.addr %s636, 8
        %s638 = scalar_lea.vmem %s10, %s637
        %p639 = pneg %p295
        %p640 = pneg %p292
        %p641 = scmp.lt.s32.totalorder %s29, 1
        %s642 = scalar_select %p641, %s29, 1
        %s643 = smul.addr %s642, 6
        %s644 = smul.addr %s643, 8
        %s645 = scalar_lea.vmem %s11, %s644
        %p646 = pneg %p321
        %p647 = pneg %p318
        %p648 = scmp.lt.s32.totalorder %s29, 1
        %s649 = scalar_select %p648, %s29, 1
        %s650 = smul.addr %s649, 6
        %s651 = smul.addr %s650, 8
        %s652 = scalar_lea.vmem %s12, %s651
        %p653 = pneg %p347
        %p654 = pneg %p344
        %p655 = pneg %p368
        %p656 = pneg %p365
        %p657 = pneg %p389
        %p658 = pneg %p386
        %p659 = pneg %p410
        %p660 = pneg %p407
        %p661 = pneg %p431
        %p662 = pneg %p428
        %p663 = pneg %p452
        %p664 = pneg %p449
        %p665 = scmp.lt.s32.totalorder %s29, 1
        %s666 = scalar_select %p665, %s29, 1
        %s667 = smul.addr %s666, 4
        %s668 = smul.addr %s667, 8
        %s669 = scalar_lea.vmem %s3, %s668
        %p670 = scmp.lt.s32.totalorder %s29, 1
        %s671 = scalar_select %p670, %s29, 1
        %s672 = smul.addr %s671, 4
        %s673 = smul.addr %s672, 8
        %s674 = scalar_lea.vmem %s4, %s673
        %p675 = scmp.lt.s32.totalorder %s29, 1
        %s676 = scalar_select %p675, %s29, 1
        %s677 = smul.addr %s676, 4
        %s678 = smul.addr %s677, 8
        %s679 = scalar_lea.vmem %s5, %s678
        %p680 = scmp.lt.s32.totalorder %s29, 1
        %s681 = scalar_select %p680, %s29, 1
        %s682 = smul.addr %s681, 4
        %s683 = smul.addr %s682, 8
        %s684 = scalar_lea.vmem %s6, %s683
        %p685 = scmp.lt.s32.totalorder %s29, 1
        %s686 = scalar_select %p685, %s29, 1
        %s687 = smul.addr %s686, 4
        %s688 = smul.addr %s687, 8
        %s689 = scalar_lea.vmem %s7, %s688
        %p690 = scmp.lt.s32.totalorder %s29, 1
        %s691 = scalar_select %p690, %s29, 1
        %s692 = smul.addr %s691, 4
        %s693 = smul.addr %s692, 8
        %s694 = scalar_lea.vmem %s8, %s693
        %p695 = scmp.lt.s32.totalorder %s29, 1
        %s696 = scalar_select %p695, %s29, 1
        %s697 = smul.addr %s696, 6
        %s698 = smul.addr %s697, 8
        %s699 = scalar_lea.vmem %s9, %s698
        %p700 = scmp.lt.s32.totalorder %s29, 1
        %s701 = scalar_select %p700, %s29, 1
        %s702 = smul.addr %s701, 6
        %s703 = smul.addr %s702, 8
        %s704 = scalar_lea.vmem %s10, %s703
        %p705 = scmp.lt.s32.totalorder %s29, 1
        %s706 = scalar_select %p705, %s29, 1
        %s707 = smul.addr %s706, 6
        %s708 = smul.addr %s707, 8
        %s709 = scalar_lea.vmem %s11, %s708
        %p710 = scmp.lt.s32.totalorder %s29, 1
        %s711 = scalar_select %p710, %s29, 1
        %s712 = smul.addr %s711, 6
        %s713 = smul.addr %s712, 8
        %s714 = scalar_lea.vmem %s12, %s713
        %p716 = scmp.eq.s32.totalorder %s29, 0
        // Predicated region
        $region89: #{tpu_custom_call.1} parent=87 // pred_check
          %p717 = pneg %p716
        $region90: #{tpu_custom_call.1} parent=87 // pred_check_branch
          %719 = sbr.rel (%p717) target = $region92
        $region91: #{tpu_custom_call.1} parent=87 // pred_region
          %v720 = vld [vmem:[%s0] sm:$0xff]
          %v721 = vld [vmem:[%s0 + $0x8] sm:$0xff]
          %vm722 = vcmask 64512
          %723 = vst.msk [vmem:[#allocation2] sm:$0xff] %vm722, %v720
          %724 = vst.msk [vmem:[#allocation2 + $0x8] sm:$0xff] %vm722, %v721
        $region92: #{tpu_custom_call.1} parent=87 // pred_fallthru
          _
        %v725 = vld [vmem:[#allocation2] sm:$0xff]
        %v726 = vld [vmem:[#allocation2 + $0x8] sm:$0xff]
        %v727 = vld [vmem:[%s1] sm:$0xf]
        %v728 = vpack.c.bf16 %v726, %v725
        %vm729 = vcmask 64512
        %v731 = vsel %vm729, %v728, 0
        %vm733 = vcmask 1043456
        %v735 = vsel %vm733, %v727, 0
        %737 = vmatprep.subr.bf16.mxu0 0
        %738 = vmatpush1.bf16.msra.mxu0 %v735
        %739 = vmatprep.subr.bf16.mxu0 0
        %740 = vmatpush1.bf16.msra.mxu0 0
        %741 = vmatprep.subr.bf16.mxu0 0
        %742 = vmatpush1.bf16.msra.mxu0 0
        %743 = vmatprep.subr.bf16.mxu0 0
        %744 = vmatpush1.bf16.msra.mxu0 0
        %745 = vmatprep.subr.bf16.mxu0 0
        %746 = vmatpush1.bf16.msra.mxu0 0
        %747 = vmatprep.subr.bf16.mxu0 0
        %748 = vmatpush1.bf16.msra.mxu0 0
        %749 = vmatprep.subr.bf16.mxu0 0
        %750 = vmatpush1.bf16.msra.mxu0 0
        %751 = vmatprep.subr.bf16.mxu0 0
        %752 = vmatpush1.bf16.msra.mxu0 0
        %753 = vmatprep.subr.bf16.mxu0 0
        %754 = vmatpush1.bf16.msra.mxu0 0
        %755 = vmatprep.subr.bf16.mxu0 0
        %756 = vmatpush1.bf16.msra.mxu0 0
        %757 = vmatprep.subr.bf16.mxu0 0
        %758 = vmatpush1.bf16.msra.mxu0 0
        %759 = vmatprep.subr.bf16.mxu0 0
        %760 = vmatpush1.bf16.msra.mxu0 0
        %761 = vmatprep.subr.bf16.mxu0 0
        %762 = vmatpush1.bf16.msra.mxu0 0
        %763 = vmatprep.subr.bf16.mxu0 0
        %764 = vmatpush1.bf16.msra.mxu0 0
        %765 = vmatprep.subr.bf16.mxu0 0
        %766 = vmatpush1.bf16.msra.mxu0 0
        %767 = vmatprep.subr.bf16.mxu0 0
        %768 = vmatpush1.bf16.msra.mxu0 0
        %769 = vmatprep.mubr.bf16.mxu0 0
        %770 = vmatmul.mubr.bf16.gmra.mrb[0].mxu0 %v731
        %v771 = vpop.f32.mrb[0].mxu0
        %v772 = vadd.f32 0.0, %v771
        %v773 = vpop.f32.mrb[0].mxu0
        %v774 = vpop.f32.mrb[0].mxu0
        %v775 = vadd.f32 0.0, %v774
        %v776 = vpop.f32.mrb[0].mxu0
        %777 = vdwg.mxu0
        %v778 = vld [vmem:[%s669] sm:$0xff]
        %v779 = vld [vmem:[%s669 + $0x8] sm:$0xff]
        %v780 = vld [vmem:[%s669 + $0x10] sm:$0xff]
        %v781 = vld [vmem:[%s669 + $0x18] sm:$0xff]
        %v782 = vld [vmem:[%s674] sm:$0xff]
        %v783 = vld [vmem:[%s674 + $0x8] sm:$0xff]
        %v784 = vld [vmem:[%s674 + $0x10] sm:$0xff]
        %v785 = vld [vmem:[%s674 + $0x18] sm:$0xff]
        %788 = vrot.lane.b32.xlu0 %v772, 120
        %v789 = vpop.permute.xlu0 %788
        %790 = vrot.lane.b32.xlu0 %v775, 120
        %v791 = vpop.permute.xlu0 %790
        %vm794 = vcmask 130048
        %v796 = vsel %vm794, %v782, 0
        %v799 = vsel %vm794, %v783, 0
        %v802 = vsel %vm794, %v784, 0
        %v805 = vsel %vm794, %v785, 0
        %807 = vmatprep.subr.mxu0 0.0
        %808 = vmatpush1.msra.mxu0 %v789
        %809 = vmatprep.subr.mxu0 0.0
        %810 = vmatpush1.msra.mxu0 %v791
        %811 = vmatprep.subr.mxu0 0.0
        %812 = vmatpush1.msra.mxu0 0.0
        %813 = vmatprep.subr.mxu0 0.0
        %814 = vmatpush1.msra.mxu0 0.0
        %815 = vmatprep.subr.mxu0 0.0
        %816 = vmatpush1.msra.mxu0 0.0
        %817 = vmatprep.subr.mxu0 0.0
        %818 = vmatpush1.msra.mxu0 0.0
        %819 = vmatprep.subr.mxu0 0.0
        %820 = vmatpush1.msra.mxu0 0.0
        %821 = vmatprep.subr.mxu0 0.0
        %822 = vmatpush1.msra.mxu0 0.0
        %823 = vmatprep.subr.mxu0 0.0
        %824 = vmatpush1.msra.mxu0 0.0
        %825 = vmatprep.subr.mxu0 0.0
        %826 = vmatpush1.msra.mxu0 0.0
        %827 = vmatprep.subr.mxu0 0.0
        %828 = vmatpush1.msra.mxu0 0.0
        %829 = vmatprep.subr.mxu0 0.0
        %830 = vmatpush1.msra.mxu0 0.0
        %831 = vmatprep.subr.mxu0 0.0
        %832 = vmatpush1.msra.mxu0 0.0
        %833 = vmatprep.subr.mxu0 0.0
        %834 = vmatpush1.msra.mxu0 0.0
        %835 = vmatprep.subr.mxu0 0.0
        %836 = vmatpush1.msra.mxu0 0.0
        %837 = vmatprep.subr.mxu0 0.0
        %838 = vmatpush1.msra.mxu0 0.0
        %839 = vmatprep.subr.mxu0 0.0
        %840 = vmatpush1.msra.mxu0 0.0
        %841 = vmatprep.subr.mxu0 0.0
        %842 = vmatpush1.msra.mxu0 0.0
        %843 = vmatprep.subr.mxu0 0.0
        %844 = vmatpush1.msra.mxu0 0.0
        %845 = vmatprep.subr.mxu0 0.0
        %846 = vmatpush1.msra.mxu0 0.0
        %847 = vmatprep.subr.mxu0 0.0
        %848 = vmatpush1.msra.mxu0 0.0
        %849 = vmatprep.subr.mxu0 0.0
        %850 = vmatpush1.msra.mxu0 0.0
        %851 = vmatprep.subr.mxu0 0.0
        %852 = vmatpush1.msra.mxu0 0.0
        %853 = vmatprep.subr.mxu0 0.0
        %854 = vmatpush1.msra.mxu0 0.0
        %855 = vmatprep.subr.mxu0 0.0
        %856 = vmatpush1.msra.mxu0 0.0
        %857 = vmatprep.subr.mxu0 0.0
        %858 = vmatpush1.msra.mxu0 0.0
        %859 = vmatprep.subr.mxu0 0.0
        %860 = vmatpush1.msra.mxu0 0.0
        %861 = vmatprep.subr.mxu0 0.0
        %862 = vmatpush1.msra.mxu0 0.0
        %863 = vmatprep.subr.mxu0 0.0
        %864 = vmatpush1.msra.mxu0 0.0
        %865 = vmatprep.subr.mxu0 0.0
        %866 = vmatpush1.msra.mxu0 0.0
        %867 = vmatprep.subr.mxu0 0.0
        %868 = vmatpush1.msra.mxu0 0.0
        %869 = vmatprep.subr.mxu0 0.0
        %870 = vmatpush1.msra.mxu0 0.0
        %871 = vmatprep.mubr.f32.mxu0 0.0
        %872 = vmatmul.mubr.f32.gmra.mrb[0].mxu0 %v796
        %v873 = vpop.f32.mrb[0].mxu0
        %v874 = vadd.f32 0.0, %v873
        %v875 = vpop.f32.mrb[0].mxu0
        %876 = vmatprep.mubr.f32.mxu0 0.0
        %877 = vmatmul.mubr.f32.gmra.mrb[0].mxu0 %v799
        %v878 = vpop.f32.mrb[0].mxu0
        %v879 = vadd.f32 0.0, %v878
        %v880 = vpop.f32.mrb[0].mxu0
        %881 = vmatprep.mubr.f32.mxu0 0.0
        %882 = vmatmul.mubr.f32.gmra.mrb[0].mxu0 %v802
        %v883 = vpop.f32.mrb[0].mxu0
        %v884 = vadd.f32 0.0, %v883
        %v885 = vpop.f32.mrb[0].mxu0
        %886 = vmatprep.mubr.f32.mxu0 0.0
        %887 = vmatmul.mubr.f32.gmra.mrb[0].mxu0 %v805
        %v888 = vpop.f32.mrb[0].mxu0
        %v889 = vadd.f32 0.0, %v888
        %v890 = vpop.f32.mrb[0].mxu0
        %891 = vdwg.mxu0
        %v893 = vsel %vm794, %v778, 0
        %v896 = vsel %vm794, %v779, 0
        %v899 = vsel %vm794, %v780, 0
        %v902 = vsel %vm794, %v781, 0
        %904 = vmatprep.subr.mxu0 0.0
        %905 = vmatpush1.msra.mxu0 %v772
        %906 = vmatprep.subr.mxu0 0.0
        %907 = vmatpush1.msra.mxu0 %v775
        %908 = vmatprep.subr.mxu0 0.0
        %909 = vmatpush1.msra.mxu0 0.0
        %910 = vmatprep.subr.mxu0 0.0
        %911 = vmatpush1.msra.mxu0 0.0
        %912 = vmatprep.subr.mxu0 0.0
        %913 = vmatpush1.msra.mxu0 0.0
        %914 = vmatprep.subr.mxu0 0.0
        %915 = vmatpush1.msra.mxu0 0.0
        %916 = vmatprep.subr.mxu0 0.0
        %917 = vmatpush1.msra.mxu0 0.0
        %918 = vmatprep.subr.mxu0 0.0
        %919 = vmatpush1.msra.mxu0 0.0
        %920 = vmatprep.subr.mxu0 0.0
        %921 = vmatpush1.msra.mxu0 0.0
        %922 = vmatprep.subr.mxu0 0.0
        %923 = vmatpush1.msra.mxu0 0.0
        %924 = vmatprep.subr.mxu0 0.0
        %925 = vmatpush1.msra.mxu0 0.0
        %926 = vmatprep.subr.mxu0 0.0
        %927 = vmatpush1.msra.mxu0 0.0
        %928 = vmatprep.subr.mxu0 0.0
        %929 = vmatpush1.msra.mxu0 0.0
        %930 = vmatprep.subr.mxu0 0.0
        %931 = vmatpush1.msra.mxu0 0.0
        %932 = vmatprep.subr.mxu0 0.0
        %933 = vmatpush1.msra.mxu0 0.0
        %934 = vmatprep.subr.mxu0 0.0
        %935 = vmatpush1.msra.mxu0 0.0
        %936 = vmatprep.subr.mxu0 0.0
        %937 = vmatpush1.msra.mxu0 0.0
        %938 = vmatprep.subr.mxu0 0.0
        %939 = vmatpush1.msra.mxu0 0.0
        %940 = vmatprep.subr.mxu0 0.0
        %941 = vmatpush1.msra.mxu0 0.0
        %942 = vmatprep.subr.mxu0 0.0
        %943 = vmatpush1.msra.mxu0 0.0
        %944 = vmatprep.subr.mxu0 0.0
        %945 = vmatpush1.msra.mxu0 0.0
        %946 = vmatprep.subr.mxu0 0.0
        %947 = vmatpush1.msra.mxu0 0.0
        %948 = vmatprep.subr.mxu0 0.0
        %949 = vmatpush1.msra.mxu0 0.0
        %950 = vmatprep.subr.mxu0 0.0
        %951 = vmatpush1.msra.mxu0 0.0
        %952 = vmatprep.subr.mxu0 0.0
        %953 = vmatpush1.msra.mxu0 0.0
        %954 = vmatprep.subr.mxu0 0.0
        %955 = vmatpush1.msra.mxu0 0.0
        %956 = vmatprep.subr.mxu0 0.0
        %957 = vmatpush1.msra.mxu0 0.0
        %958 = vmatprep.subr.mxu0 0.0
        %959 = vmatpush1.msra.mxu0 0.0
        %960 = vmatprep.subr.mxu0 0.0
        %961 = vmatpush1.msra.mxu0 0.0
        %962 = vmatprep.subr.mxu0 0.0
        %963 = vmatpush1.msra.mxu0 0.0
        %964 = vmatprep.subr.mxu0 0.0
        %965 = vmatpush1.msra.mxu0 0.0
        %966 = vmatprep.subr.mxu0 0.0
        %967 = vmatpush1.msra.mxu0 0.0
        %968 = vmatprep.mubr.f32.mxu0 0.0
        %969 = vmatmul.mubr.f32.gmra.mrb[0].mxu0 %v893
        %v970 = vpop.f32.mrb[0].mxu0
        %v971 = vadd.f32 %v874, %v970
        %v972 = vpop.f32.mrb[0].mxu0
        %973 = vmatprep.mubr.f32.mxu0 0.0
        %974 = vmatmul.mubr.f32.gmra.mrb[0].mxu0 %v896
        %v975 = vpop.f32.mrb[0].mxu0
        %v976 = vadd.f32 %v879, %v975
        %v977 = vpop.f32.mrb[0].mxu0
        %978 = vmatprep.mubr.f32.mxu0 0.0
        %979 = vmatmul.mubr.f32.gmra.mrb[0].mxu0 %v899
        %v980 = vpop.f32.mrb[0].mxu0
        %v981 = vadd.f32 %v884, %v980
        %v982 = vpop.f32.mrb[0].mxu0
        %983 = vmatprep.mubr.f32.mxu0 0.0
        %984 = vmatmul.mubr.f32.gmra.mrb[0].mxu0 %v902
        %v985 = vpop.f32.mrb[0].mxu0
        %v986 = vadd.f32 %v889, %v985
        %v987 = vpop.f32.mrb[0].mxu0
        %988 = vdwg.mxu0
        %v989 = vld [vmem:[%s679] sm:$0xff]
        %v990 = vld [vmem:[%s679 + $0x8] sm:$0xff]
        %v991 = vld [vmem:[%s679 + $0x10] sm:$0xff]
        %v992 = vld [vmem:[%s679 + $0x18] sm:$0xff]
        %994 = vset.pattern.permute.xlu0 0
        %995 = vperm.xlu0 %994, %v989
        %v996 = vpop.permute.xlu0 %995
        %999 = vset.pattern.permute.xlu0 0
        %1000 = vperm.xlu0 %999, %v990
        %v1001 = vpop.permute.xlu0 %1000
        %1004 = vset.pattern.permute.xlu0 0
        %1005 = vperm.xlu0 %1004, %v991
        %v1006 = vpop.permute.xlu0 %1005
        %1009 = vset.pattern.permute.xlu0 0
        %1010 = vperm.xlu0 %1009, %v992
        %v1011 = vpop.permute.xlu0 %1010
        %v1013 = vadd.f32 %v971, %v996
        %v1014 = vadd.f32 %v976, %v1001
        %v1015 = vadd.f32 %v981, %v1006
        %v1016 = vadd.f32 %v986, %v1011
        %v1017 = vld [vmem:[%s684] sm:$0xff]
        %v1018 = vld [vmem:[%s684 + $0x8] sm:$0xff]
        %v1019 = vld [vmem:[%s684 + $0x10] sm:$0xff]
        %v1020 = vld [vmem:[%s684 + $0x18] sm:$0xff]
        %v1021 = vld [vmem:[%s689] sm:$0xff]
        %v1022 = vld [vmem:[%s689 + $0x8] sm:$0xff]
        %v1023 = vld [vmem:[%s689 + $0x10] sm:$0xff]
        %v1024 = vld [vmem:[%s689 + $0x18] sm:$0xff]
        %v1026 = vsel %vm794, %v1021, 0
        %v1029 = vsel %vm794, %v1022, 0
        %v1032 = vsel %vm794, %v1023, 0
        %v1035 = vsel %vm794, %v1024, 0
        %1037 = vmatprep.subr.mxu0 0.0
        %1038 = vmatpush1.msra.mxu0 %v772
        %1039 = vmatprep.subr.mxu0 0.0
        %1040 = vmatpush1.msra.mxu0 %v775
        %1041 = vmatprep.subr.mxu0 0.0
        %1042 = vmatpush1.msra.mxu0 0.0
        %1043 = vmatprep.subr.mxu0 0.0
        %1044 = vmatpush1.msra.mxu0 0.0
        %1045 = vmatprep.subr.mxu0 0.0
        %1046 = vmatpush1.msra.mxu0 0.0
        %1047 = vmatprep.subr.mxu0 0.0
        %1048 = vmatpush1.msra.mxu0 0.0
        %1049 = vmatprep.subr.mxu0 0.0
        %1050 = vmatpush1.msra.mxu0 0.0
        %1051 = vmatprep.subr.mxu0 0.0
        %1052 = vmatpush1.msra.mxu0 0.0
        %1053 = vmatprep.subr.mxu0 0.0
        %1054 = vmatpush1.msra.mxu0 0.0
        %1055 = vmatprep.subr.mxu0 0.0
        %1056 = vmatpush1.msra.mxu0 0.0
        %1057 = vmatprep.subr.mxu0 0.0
        %1058 = vmatpush1.msra.mxu0 0.0
        %1059 = vmatprep.subr.mxu0 0.0
        %1060 = vmatpush1.msra.mxu0 0.0
        %1061 = vmatprep.subr.mxu0 0.0
        %1062 = vmatpush1.msra.mxu0 0.0
        %1063 = vmatprep.subr.mxu0 0.0
        %1064 = vmatpush1.msra.mxu0 0.0
        %1065 = vmatprep.subr.mxu0 0.0
        %1066 = vmatpush1.msra.mxu0 0.0
        %1067 = vmatprep.subr.mxu0 0.0
        %1068 = vmatpush1.msra.mxu0 0.0
        %1069 = vmatprep.subr.mxu0 0.0
        %1070 = vmatpush1.msra.mxu0 0.0
        %1071 = vmatprep.subr.mxu0 0.0
        %1072 = vmatpush1.msra.mxu0 0.0
        %1073 = vmatprep.subr.mxu0 0.0
        %1074 = vmatpush1.msra.mxu0 0.0
        %1075 = vmatprep.subr.mxu0 0.0
        %1076 = vmatpush1.msra.mxu0 0.0
        %1077 = vmatprep.subr.mxu0 0.0
        %1078 = vmatpush1.msra.mxu0 0.0
        %1079 = vmatprep.subr.mxu0 0.0
        %1080 = vmatpush1.msra.mxu0 0.0
        %1081 = vmatprep.subr.mxu0 0.0
        %1082 = vmatpush1.msra.mxu0 0.0
        %1083 = vmatprep.subr.mxu0 0.0
        %1084 = vmatpush1.msra.mxu0 0.0
        %1085 = vmatprep.subr.mxu0 0.0
        %1086 = vmatpush1.msra.mxu0 0.0
        %1087 = vmatprep.subr.mxu0 0.0
        %1088 = vmatpush1.msra.mxu0 0.0
        %1089 = vmatprep.subr.mxu0 0.0
        %1090 = vmatpush1.msra.mxu0 0.0
        %1091 = vmatprep.subr.mxu0 0.0
        %1092 = vmatpush1.msra.mxu0 0.0
        %1093 = vmatprep.subr.mxu0 0.0
        %1094 = vmatpush1.msra.mxu0 0.0
        %1095 = vmatprep.subr.mxu0 0.0
        %1096 = vmatpush1.msra.mxu0 0.0
        %1097 = vmatprep.subr.mxu0 0.0
        %1098 = vmatpush1.msra.mxu0 0.0
        %1099 = vmatprep.subr.mxu0 0.0
        %1100 = vmatpush1.msra.mxu0 0.0
        %1101 = vmatprep.mubr.f32.mxu0 0.0
        %1102 = vmatmul.mubr.f32.gmra.mrb[0].mxu0 %v1026
        %v1103 = vpop.f32.mrb[0].mxu0
        %v1104 = vadd.f32 0.0, %v1103
        %v1105 = vpop.f32.mrb[0].mxu0
        %1106 = vmatprep.mubr.f32.mxu0 0.0
        %1107 = vmatmul.mubr.f32.gmra.mrb[0].mxu0 %v1029
        %v1108 = vpop.f32.mrb[0].mxu0
        %v1109 = vadd.f32 0.0, %v1108
        %v1110 = vpop.f32.mrb[0].mxu0
        %1111 = vmatprep.mubr.f32.mxu0 0.0
        %1112 = vmatmul.mubr.f32.gmra.mrb[0].mxu0 %v1032
        %v1113 = vpop.f32.mrb[0].mxu0
        %v1114 = vadd.f32 0.0, %v1113
        %v1115 = vpop.f32.mrb[0].mxu0
        %1116 = vmatprep.mubr.f32.mxu0 0.0
        %1117 = vmatmul.mubr.f32.gmra.mrb[0].mxu0 %v1035
        %v1118 = vpop.f32.mrb[0].mxu0
        %v1119 = vadd.f32 0.0, %v1118
        %v1120 = vpop.f32.mrb[0].mxu0
        %1121 = vdwg.mxu0
        %v1123 = vsel %vm794, %v1017, 0
        %v1126 = vsel %vm794, %v1018, 0
        %v1129 = vsel %vm794, %v1019, 0
        %v1132 = vsel %vm794, %v1020, 0
        %1134 = vmatprep.subr.mxu0 0.0
        %1135 = vmatpush1.msra.mxu0 %v789
        %1136 = vmatprep.subr.mxu0 0.0
        %1137 = vmatpush1.msra.mxu0 %v791
        %1138 = vmatprep.subr.mxu0 0.0
        %1139 = vmatpush1.msra.mxu0 0.0
        %1140 = vmatprep.subr.mxu0 0.0
        %1141 = vmatpush1.msra.mxu0 0.0
        %1142 = vmatprep.subr.mxu0 0.0
        %1143 = vmatpush1.msra.mxu0 0.0
        %1144 = vmatprep.subr.mxu0 0.0
        %1145 = vmatpush1.msra.mxu0 0.0
        %1146 = vmatprep.subr.mxu0 0.0
        %1147 = vmatpush1.msra.mxu0 0.0
        %1148 = vmatprep.subr.mxu0 0.0
        %1149 = vmatpush1.msra.mxu0 0.0
        %1150 = vmatprep.subr.mxu0 0.0
        %1151 = vmatpush1.msra.mxu0 0.0
        %1152 = vmatprep.subr.mxu0 0.0
        %1153 = vmatpush1.msra.mxu0 0.0
        %1154 = vmatprep.subr.mxu0 0.0
        %1155 = vmatpush1.msra.mxu0 0.0
        %1156 = vmatprep.subr.mxu0 0.0
        %1157 = vmatpush1.msra.mxu0 0.0
        %1158 = vmatprep.subr.mxu0 0.0
        %1159 = vmatpush1.msra.mxu0 0.0
        %1160 = vmatprep.subr.mxu0 0.0
        %1161 = vmatpush1.msra.mxu0 0.0
        %1162 = vmatprep.subr.mxu0 0.0
        %1163 = vmatpush1.msra.mxu0 0.0
        %1164 = vmatprep.subr.mxu0 0.0
        %1165 = vmatpush1.msra.mxu0 0.0
        %1166 = vmatprep.subr.mxu0 0.0
        %1167 = vmatpush1.msra.mxu0 0.0
        %1168 = vmatprep.subr.mxu0 0.0
        %1169 = vmatpush1.msra.mxu0 0.0
        %1170 = vmatprep.subr.mxu0 0.0
        %1171 = vmatpush1.msra.mxu0 0.0
        %1172 = vmatprep.subr.mxu0 0.0
        %1173 = vmatpush1.msra.mxu0 0.0
        %1174 = vmatprep.subr.mxu0 0.0
        %1175 = vmatpush1.msra.mxu0 0.0
        %1176 = vmatprep.subr.mxu0 0.0
        %1177 = vmatpush1.msra.mxu0 0.0
        %1178 = vmatprep.subr.mxu0 0.0
        %1179 = vmatpush1.msra.mxu0 0.0
        %1180 = vmatprep.subr.mxu0 0.0
        %1181 = vmatpush1.msra.mxu0 0.0
        %1182 = vmatprep.subr.mxu0 0.0
        %1183 = vmatpush1.msra.mxu0 0.0
        %1184 = vmatprep.subr.mxu0 0.0
        %1185 = vmatpush1.msra.mxu0 0.0
        %1186 = vmatprep.subr.mxu0 0.0
        %1187 = vmatpush1.msra.mxu0 0.0
        %1188 = vmatprep.subr.mxu0 0.0
        %1189 = vmatpush1.msra.mxu0 0.0
        %1190 = vmatprep.subr.mxu0 0.0
        %1191 = vmatpush1.msra.mxu0 0.0
        %1192 = vmatprep.subr.mxu0 0.0
        %1193 = vmatpush1.msra.mxu0 0.0
        %1194 = vmatprep.subr.mxu0 0.0
        %1195 = vmatpush1.msra.mxu0 0.0
        %1196 = vmatprep.subr.mxu0 0.0
        %1197 = vmatpush1.msra.mxu0 0.0
        %1198 = vmatprep.mubr.f32.mxu0 0.0
        %1199 = vmatmul.mubr.f32.gmra.mrb[0].mxu0 %v1123
        %v1200 = vpop.f32.mrb[0].mxu0
        %v1201 = vadd.f32 %v1104, %v1200
        %v1202 = vpop.f32.mrb[0].mxu0
        %1203 = vmatprep.mubr.f32.mxu0 0.0
        %1204 = vmatmul.mubr.f32.gmra.mrb[0].mxu0 %v1126
        %v1205 = vpop.f32.mrb[0].mxu0
        %v1206 = vadd.f32 %v1109, %v1205
        %v1207 = vpop.f32.mrb[0].mxu0
        %1208 = vmatprep.mubr.f32.mxu0 0.0
        %1209 = vmatmul.mubr.f32.gmra.mrb[0].mxu0 %v1129
        %v1210 = vpop.f32.mrb[0].mxu0
        %v1211 = vadd.f32 %v1114, %v1210
        %v1212 = vpop.f32.mrb[0].mxu0
        %1213 = vmatprep.mubr.f32.mxu0 0.0
        %1214 = vmatmul.mubr.f32.gmra.mrb[0].mxu0 %v1132
        %v1215 = vpop.f32.mrb[0].mxu0
        %v1216 = vadd.f32 %v1119, %v1215
        %v1217 = vpop.f32.mrb[0].mxu0
        %1218 = vdwg.mxu0
        %v1219 = vld [vmem:[%s694] sm:$0xff]
        %v1220 = vld [vmem:[%s694 + $0x8] sm:$0xff]
        %v1221 = vld [vmem:[%s694 + $0x10] sm:$0xff]
        %v1222 = vld [vmem:[%s694 + $0x18] sm:$0xff]
        %1224 = vset.pattern.permute.xlu0 0
        %1225 = vperm.xlu0 %1224, %v1219
        %v1226 = vpop.permute.xlu0 %1225
        %1229 = vset.pattern.permute.xlu0 0
        %1230 = vperm.xlu0 %1229, %v1220
        %v1231 = vpop.permute.xlu0 %1230
        %1234 = vset.pattern.permute.xlu0 0
        %1235 = vperm.xlu0 %1234, %v1221
        %v1236 = vpop.permute.xlu0 %1235
        %1239 = vset.pattern.permute.xlu0 0
        %1240 = vperm.xlu0 %1239, %v1222
        %v1241 = vpop.permute.xlu0 %1240
        %v1243 = vadd.f32 %v1201, %v1226
        %v1244 = vadd.f32 %v1206, %v1231
        %v1245 = vadd.f32 %v1211, %v1236
        %v1246 = vadd.f32 %v1216, %v1241
        %v1247 = vpack.c.bf16 %v1014, %v1013
        %v1248 = vpack.c.bf16 %v1016, %v1015
        %v1249 = vpack.c.bf16 %v1244, %v1243
        %v1250 = vpack.c.bf16 %v1246, %v1245
        %v1252 = vsel %vm729, %v1249, 0
        %v1255 = vsel %vm729, %v1250, 0
        %v1257 = vsel %vm729, %v727, 0
        %1259 = vmatprep.subr.bf16.mxu0 0
        %1260 = vmatpush1.bf16.xpose.msra.mxu0 %v1257
        %1261 = vmatprep.subr.bf16.mxu0 0
        %1262 = vmatpush1.bf16.xpose.msra.mxu0 0
        %1263 = vmatprep.subr.bf16.mxu0 0
        %1264 = vmatpush1.bf16.xpose.msra.mxu0 0
        %1265 = vmatprep.subr.bf16.mxu0 0
        %1266 = vmatpush1.bf16.xpose.msra.mxu0 0
        %1267 = vmatprep.subr.bf16.mxu0 0
        %1268 = vmatpush1.bf16.xpose.msra.mxu0 0
        %1269 = vmatprep.subr.bf16.mxu0 0
        %1270 = vmatpush1.bf16.xpose.msra.mxu0 0
        %1271 = vmatprep.subr.bf16.mxu0 0
        %1272 = vmatpush1.bf16.xpose.msra.mxu0 0
        %1273 = vmatprep.subr.bf16.mxu0 0
        %1274 = vmatpush1.bf16.xpose.msra.mxu0 0
        %1275 = vmatprep.subr.bf16.mxu0 0
        %1276 = vmatpush1.bf16.xpose.msra.mxu0 0
        %1277 = vmatprep.subr.bf16.mxu0 0
        %1278 = vmatpush1.bf16.xpose.msra.mxu0 0
        %1279 = vmatprep.subr.bf16.mxu0 0
        %1280 = vmatpush1.bf16.xpose.msra.mxu0 0
        %1281 = vmatprep.subr.bf16.mxu0 0
        %1282 = vmatpush1.bf16.xpose.msra.mxu0 0
        %1283 = vmatprep.subr.bf16.mxu0 0
        %1284 = vmatpush1.bf16.xpose.msra.mxu0 0
        %1285 = vmatprep.subr.bf16.mxu0 0
        %1286 = vmatpush1.bf16.xpose.msra.mxu0 0
        %1287 = vmatprep.subr.bf16.mxu0 0
        %1288 = vmatpush1.bf16.xpose.msra.mxu0 0
        %1289 = vmatprep.subr.bf16.mxu0 0
        %1290 = vmatpush1.bf16.xpose.msra.mxu0 0
        %1291 = vmatprep.mubr.bf16.mxu0 0
        %1292 = vmatmul.mubr.bf16.gmra.mrb[0].mxu0 %v1252
        %v1293 = vpop.f32.mrb[0].mxu0
        %v1294 = vadd.f32 0.0, %v1293
        %v1295 = vpop.f32.mrb[0].mxu0
        %v1296 = vpop.f32.mrb[0].mxu0
        %v1297 = vadd.f32 0.0, %v1296
        %v1298 = vpop.f32.mrb[0].mxu0
        %1299 = vmatprep.mubr.bf16.mxu0 0
        %1300 = vmatmul.mubr.bf16.gmra.mrb[0].mxu0 %v1255
        %v1301 = vpop.f32.mrb[0].mxu0
        %v1302 = vadd.f32 0.0, %v1301
        %v1303 = vpop.f32.mrb[0].mxu0
        %v1304 = vpop.f32.mrb[0].mxu0
        %v1305 = vadd.f32 0.0, %v1304
        %v1306 = vpop.f32.mrb[0].mxu0
        %1307 = vdwg.mxu0
        %v1309 = vunpack.c.l.b16 %v727
        %v1310 = vpack.c.b16 %v1309, %v1309
        %1311 = vrot.lane.b32.xlu0 %v1310, 120
        %v1312 = vpop.permute.xlu0 %1311
        %v1314 = vsel %vm729, %v1247, 0
        %v1317 = vsel %vm729, %v1248, 0
        %v1320 = vsel %vm729, %v1312, 0
        %1322 = vmatprep.subr.bf16.mxu0 0
        %1323 = vmatpush1.bf16.xpose.msra.mxu0 %v1320
        %1324 = vmatprep.subr.bf16.mxu0 0
        %1325 = vmatpush1.bf16.xpose.msra.mxu0 0
        %1326 = vmatprep.subr.bf16.mxu0 0
        %1327 = vmatpush1.bf16.xpose.msra.mxu0 0
        %1328 = vmatprep.subr.bf16.mxu0 0
        %1329 = vmatpush1.bf16.xpose.msra.mxu0 0
        %1330 = vmatprep.subr.bf16.mxu0 0
        %1331 = vmatpush1.bf16.xpose.msra.mxu0 0
        %1332 = vmatprep.subr.bf16.mxu0 0
        %1333 = vmatpush1.bf16.xpose.msra.mxu0 0
        %1334 = vmatprep.subr.bf16.mxu0 0
        %1335 = vmatpush1.bf16.xpose.msra.mxu0 0
        %1336 = vmatprep.subr.bf16.mxu0 0
        %1337 = vmatpush1.bf16.xpose.msra.mxu0 0
        %1338 = vmatprep.subr.bf16.mxu0 0
        %1339 = vmatpush1.bf16.xpose.msra.mxu0 0
        %1340 = vmatprep.subr.bf16.mxu0 0
        %1341 = vmatpush1.bf16.xpose.msra.mxu0 0
        %1342 = vmatprep.subr.bf16.mxu0 0
        %1343 = vmatpush1.bf16.xpose.msra.mxu0 0
        %1344 = vmatprep.subr.bf16.mxu0 0
        %1345 = vmatpush1.bf16.xpose.msra.mxu0 0
        %1346 = vmatprep.subr.bf16.mxu0 0
        %1347 = vmatpush1.bf16.xpose.msra.mxu0 0
        %1348 = vmatprep.subr.bf16.mxu0 0
        %1349 = vmatpush1.bf16.xpose.msra.mxu0 0
        %1350 = vmatprep.subr.bf16.mxu0 0
        %1351 = vmatpush1.bf16.xpose.msra.mxu0 0
        %1352 = vmatprep.subr.bf16.mxu0 0
        %1353 = vmatpush1.bf16.xpose.msra.mxu0 0
        %1354 = vmatprep.mubr.bf16.mxu0 0
        %1355 = vmatmul.mubr.bf16.gmra.mrb[0].mxu0 %v1314
        %v1356 = vpop.f32.mrb[0].mxu0
        %v1357 = vadd.f32 %v1294, %v1356
        %v1358 = vpop.f32.mrb[0].mxu0
        %v1359 = vpop.f32.mrb[0].mxu0
        %v1360 = vadd.f32 %v1297, %v1359
        %v1361 = vpop.f32.mrb[0].mxu0
        %1362 = vmatprep.mubr.bf16.mxu0 0
        %1363 = vmatmul.mubr.bf16.gmra.mrb[0].mxu0 %v1317
        %v1364 = vpop.f32.mrb[0].mxu0
        %v1365 = vadd.f32 %v1302, %v1364
        %v1366 = vpop.f32.mrb[0].mxu0
        %v1367 = vpop.f32.mrb[0].mxu0
        %v1368 = vadd.f32 %v1305, %v1367
        %v1369 = vpop.f32.mrb[0].mxu0
        %1370 = vdwg.mxu0
        %v1371 = vld [vmem:[%s699] sm:$0xff]
        %v1372 = vld [vmem:[%s699 + $0x8] sm:$0xff]
        %v1373 = vld [vmem:[%s699 + $0x10] sm:$0xff]
        %v1374 = vld [vmem:[%s699 + $0x18] sm:$0xff]
        %v1375 = vld [vmem:[%s699 + $0x20] sm:$0xff]
        %v1376 = vld [vmem:[%s699 + $0x28] sm:$0xff]
        %v1377 = vld [vmem:[%s704] sm:$0xff]
        %v1378 = vld [vmem:[%s704 + $0x8] sm:$0xff]
        %v1379 = vld [vmem:[%s704 + $0x10] sm:$0xff]
        %v1380 = vld [vmem:[%s704 + $0x18] sm:$0xff]
        %v1381 = vld [vmem:[%s704 + $0x20] sm:$0xff]
        %v1382 = vld [vmem:[%s704 + $0x28] sm:$0xff]
        %1384 = vset.pattern.permute.xlu0 0
        %1385 = vperm.xlu0 %1384, %v1377
        %v1386 = vpop.permute.xlu0 %1385
        %1389 = vset.pattern.permute.xlu0 0
        %1390 = vperm.xlu0 %1389, %v1378
        %v1391 = vpop.permute.xlu0 %1390
        %1394 = vset.pattern.permute.xlu0 0
        %1395 = vperm.xlu0 %1394, %v1379
        %v1396 = vpop.permute.xlu0 %1395
        %1399 = vset.pattern.permute.xlu0 0
        %1400 = vperm.xlu0 %1399, %v1380
        %v1401 = vpop.permute.xlu0 %1400
        %1404 = vset.pattern.permute.xlu0 0
        %1405 = vperm.xlu0 %1404, %v1381
        %v1406 = vpop.permute.xlu0 %1405
        %1409 = vset.pattern.permute.xlu0 0
        %1410 = vperm.xlu0 %1409, %v1382
        %v1411 = vpop.permute.xlu0 %1410
        %vm1413 = vcmask 261120
        %v1415 = vsel %vm1413, %v1371, 0
        %v1418 = vsel %vm1413, %v1372, 0
        %v1421 = vsel %vm1413, %v1373, 0
        %v1424 = vsel %vm1413, %v1374, 0
        %v1427 = vsel %vm1413, %v1375, 0
        %v1430 = vsel %vm1413, %v1376, 0
        %1432 = vmatprep.subr.mxu0 0.0
        %1433 = vmatpush1.msra.mxu0 %v1357
        %1434 = vmatprep.subr.mxu0 0.0
        %1435 = vmatpush1.msra.mxu0 %v1360
        %1436 = vmatprep.subr.mxu0 0.0
        %1437 = vmatpush1.msra.mxu0 %v1365
        %1438 = vmatprep.subr.mxu0 0.0
        %1439 = vmatpush1.msra.mxu0 %v1368
        %1440 = vmatprep.subr.mxu0 0.0
        %1441 = vmatpush1.msra.mxu0 0.0
        %1442 = vmatprep.subr.mxu0 0.0
        %1443 = vmatpush1.msra.mxu0 0.0
        %1444 = vmatprep.subr.mxu0 0.0
        %1445 = vmatpush1.msra.mxu0 0.0
        %1446 = vmatprep.subr.mxu0 0.0
        %1447 = vmatpush1.msra.mxu0 0.0
        %1448 = vmatprep.subr.mxu0 0.0
        %1449 = vmatpush1.msra.mxu0 0.0
        %1450 = vmatprep.subr.mxu0 0.0
        %1451 = vmatpush1.msra.mxu0 0.0
        %1452 = vmatprep.subr.mxu0 0.0
        %1453 = vmatpush1.msra.mxu0 0.0
        %1454 = vmatprep.subr.mxu0 0.0
        %1455 = vmatpush1.msra.mxu0 0.0
        %1456 = vmatprep.subr.mxu0 0.0
        %1457 = vmatpush1.msra.mxu0 0.0
        %1458 = vmatprep.subr.mxu0 0.0
        %1459 = vmatpush1.msra.mxu0 0.0
        %1460 = vmatprep.subr.mxu0 0.0
        %1461 = vmatpush1.msra.mxu0 0.0
        %1462 = vmatprep.subr.mxu0 0.0
        %1463 = vmatpush1.msra.mxu0 0.0
        %1464 = vmatprep.subr.mxu0 0.0
        %1465 = vmatpush1.msra.mxu0 0.0
        %1466 = vmatprep.subr.mxu0 0.0
        %1467 = vmatpush1.msra.mxu0 0.0
        %1468 = vmatprep.subr.mxu0 0.0
        %1469 = vmatpush1.msra.mxu0 0.0
        %1470 = vmatprep.subr.mxu0 0.0
        %1471 = vmatpush1.msra.mxu0 0.0
        %1472 = vmatprep.subr.mxu0 0.0
        %1473 = vmatpush1.msra.mxu0 0.0
        %1474 = vmatprep.subr.mxu0 0.0
        %1475 = vmatpush1.msra.mxu0 0.0
        %1476 = vmatprep.subr.mxu0 0.0
        %1477 = vmatpush1.msra.mxu0 0.0
        %1478 = vmatprep.subr.mxu0 0.0
        %1479 = vmatpush1.msra.mxu0 0.0
        %1480 = vmatprep.subr.mxu0 0.0
        %1481 = vmatpush1.msra.mxu0 0.0
        %1482 = vmatprep.subr.mxu0 0.0
        %1483 = vmatpush1.msra.mxu0 0.0
        %1484 = vmatprep.subr.mxu0 0.0
        %1485 = vmatpush1.msra.mxu0 0.0
        %1486 = vmatprep.subr.mxu0 0.0
        %1487 = vmatpush1.msra.mxu0 0.0
        %1488 = vmatprep.subr.mxu0 0.0
        %1489 = vmatpush1.msra.mxu0 0.0
        %1490 = vmatprep.subr.mxu0 0.0
        %1491 = vmatpush1.msra.mxu0 0.0
        %1492 = vmatprep.subr.mxu0 0.0
        %1493 = vmatpush1.msra.mxu0 0.0
        %1494 = vmatprep.subr.mxu0 0.0
        %1495 = vmatpush1.msra.mxu0 0.0
        %1496 = vmatprep.mubr.f32.mxu0 0.0
        %1497 = vmatmul.mubr.f32.gmra.mrb[0].mxu0 %v1415
        %v1498 = vpop.f32.mrb[0].mxu0
        %v1499 = vadd.f32 %v1386, %v1498
        %v1500 = vpop.f32.mrb[0].mxu0
        %1501 = vmatprep.mubr.f32.mxu0 0.0
        %1502 = vmatmul.mubr.f32.gmra.mrb[0].mxu0 %v1418
        %v1503 = vpop.f32.mrb[0].mxu0
        %v1504 = vadd.f32 %v1391, %v1503
        %v1505 = vpop.f32.mrb[0].mxu0
        %1506 = vmatprep.mubr.f32.mxu0 0.0
        %1507 = vmatmul.mubr.f32.gmra.mrb[0].mxu0 %v1421
        %v1508 = vpop.f32.mrb[0].mxu0
        %v1509 = vadd.f32 %v1396, %v1508
        %v1510 = vpop.f32.mrb[0].mxu0
        %1511 = vmatprep.mubr.f32.mxu0 0.0
        %1512 = vmatmul.mubr.f32.gmra.mrb[0].mxu0 %v1424
        %v1513 = vpop.f32.mrb[0].mxu0
        %v1514 = vadd.f32 %v1401, %v1513
        %v1515 = vpop.f32.mrb[0].mxu0
        %1516 = vmatprep.mubr.f32.mxu0 0.0
        %1517 = vmatmul.mubr.f32.gmra.mrb[0].mxu0 %v1427
        %v1518 = vpop.f32.mrb[0].mxu0
        %v1519 = vadd.f32 %v1406, %v1518
        %v1520 = vpop.f32.mrb[0].mxu0
        %1521 = vmatprep.mubr.f32.mxu0 0.0
        %1522 = vmatmul.mubr.f32.gmra.mrb[0].mxu0 %v1430
        %v1523 = vpop.f32.mrb[0].mxu0
        %v1524 = vadd.f32 %v1411, %v1523
        %v1525 = vpop.f32.mrb[0].mxu0
        %1526 = vdwg.mxu0
        %v1527 = vld [vmem:[%s709] sm:$0xff]
        %v1528 = vld [vmem:[%s709 + $0x8] sm:$0xff]
        %v1529 = vld [vmem:[%s709 + $0x10] sm:$0xff]
        %v1530 = vld [vmem:[%s709 + $0x18] sm:$0xff]
        %v1531 = vld [vmem:[%s709 + $0x20] sm:$0xff]
        %v1532 = vld [vmem:[%s709 + $0x28] sm:$0xff]
        %v1533 = vld [vmem:[%s714] sm:$0xff]
        %v1534 = vld [vmem:[%s714 + $0x8] sm:$0xff]
        %v1535 = vld [vmem:[%s714 + $0x10] sm:$0xff]
        %v1536 = vld [vmem:[%s714 + $0x18] sm:$0xff]
        %v1537 = vld [vmem:[%s714 + $0x20] sm:$0xff]
        %v1538 = vld [vmem:[%s714 + $0x28] sm:$0xff]
        %1540 = vset.pattern.permute.xlu0 0
        %1541 = vperm.xlu0 %1540, %v1533
        %v1542 = vpop.permute.xlu0 %1541
        %1545 = vset.pattern.permute.xlu0 0
        %1546 = vperm.xlu0 %1545, %v1534
        %v1547 = vpop.permute.xlu0 %1546
        %1550 = vset.pattern.permute.xlu0 0
        %1551 = vperm.xlu0 %1550, %v1535
        %v1552 = vpop.permute.xlu0 %1551
        %1555 = vset.pattern.permute.xlu0 0
        %1556 = vperm.xlu0 %1555, %v1536
        %v1557 = vpop.permute.xlu0 %1556
        %1560 = vset.pattern.permute.xlu0 0
        %1561 = vperm.xlu0 %1560, %v1537
        %v1562 = vpop.permute.xlu0 %1561
        %1565 = vset.pattern.permute.xlu0 0
        %1566 = vperm.xlu0 %1565, %v1538
        %v1567 = vpop.permute.xlu0 %1566
        %v1570 = vsel %vm794, %v1527, 0
        %v1573 = vsel %vm794, %v1528, 0
        %v1576 = vsel %vm794, %v1529, 0
        %v1579 = vsel %vm794, %v1530, 0
        %v1582 = vsel %vm794, %v1531, 0
        %v1585 = vsel %vm794, %v1532, 0
        %1587 = vmatprep.subr.mxu0 0.0
        %1588 = vmatpush1.msra.mxu0 %v725
        %1589 = vmatprep.subr.mxu0 0.0
        %1590 = vmatpush1.msra.mxu0 %v726
        %1591 = vmatprep.subr.mxu0 0.0
        %1592 = vmatpush1.msra.mxu0 0.0
        %1593 = vmatprep.subr.mxu0 0.0
        %1594 = vmatpush1.msra.mxu0 0.0
        %1595 = vmatprep.subr.mxu0 0.0
        %1596 = vmatpush1.msra.mxu0 0.0
        %1597 = vmatprep.subr.mxu0 0.0
        %1598 = vmatpush1.msra.mxu0 0.0
        %1599 = vmatprep.subr.mxu0 0.0
        %1600 = vmatpush1.msra.mxu0 0.0
        %1601 = vmatprep.subr.mxu0 0.0
        %1602 = vmatpush1.msra.mxu0 0.0
        %1603 = vmatprep.subr.mxu0 0.0
        %1604 = vmatpush1.msra.mxu0 0.0
        %1605 = vmatprep.subr.mxu0 0.0
        %1606 = vmatpush1.msra.mxu0 0.0
        %1607 = vmatprep.subr.mxu0 0.0
        %1608 = vmatpush1.msra.mxu0 0.0
        %1609 = vmatprep.subr.mxu0 0.0
        %1610 = vmatpush1.msra.mxu0 0.0
        %1611 = vmatprep.subr.mxu0 0.0
        %1612 = vmatpush1.msra.mxu0 0.0
        %1613 = vmatprep.subr.mxu0 0.0
        %1614 = vmatpush1.msra.mxu0 0.0
        %1615 = vmatprep.subr.mxu0 0.0
        %1616 = vmatpush1.msra.mxu0 0.0
        %1617 = vmatprep.subr.mxu0 0.0
        %1618 = vmatpush1.msra.mxu0 0.0
        %1619 = vmatprep.subr.mxu0 0.0
        %1620 = vmatpush1.msra.mxu0 0.0
        %1621 = vmatprep.subr.mxu0 0.0
        %1622 = vmatpush1.msra.mxu0 0.0
        %1623 = vmatprep.subr.mxu0 0.0
        %1624 = vmatpush1.msra.mxu0 0.0
        %1625 = vmatprep.subr.mxu0 0.0
        %1626 = vmatpush1.msra.mxu0 0.0
        %1627 = vmatprep.subr.mxu0 0.0
        %1628 = vmatpush1.msra.mxu0 0.0
        %1629 = vmatprep.subr.mxu0 0.0
        %1630 = vmatpush1.msra.mxu0 0.0
        %1631 = vmatprep.subr.mxu0 0.0
        %1632 = vmatpush1.msra.mxu0 0.0
        %1633 = vmatprep.subr.mxu0 0.0
        %1634 = vmatpush1.msra.mxu0 0.0
        %1635 = vmatprep.subr.mxu0 0.0
        %1636 = vmatpush1.msra.mxu0 0.0
        %1637 = vmatprep.subr.mxu0 0.0
        %1638 = vmatpush1.msra.mxu0 0.0
        %1639 = vmatprep.subr.mxu0 0.0
        %1640 = vmatpush1.msra.mxu0 0.0
        %1641 = vmatprep.subr.mxu0 0.0
        %1642 = vmatpush1.msra.mxu0 0.0
        %1643 = vmatprep.subr.mxu0 0.0
        %1644 = vmatpush1.msra.mxu0 0.0
        %1645 = vmatprep.subr.mxu0 0.0
        %1646 = vmatpush1.msra.mxu0 0.0
        %1647 = vmatprep.subr.mxu0 0.0
        %1648 = vmatpush1.msra.mxu0 0.0
        %1649 = vmatprep.subr.mxu0 0.0
        %1650 = vmatpush1.msra.mxu0 0.0
        %1651 = vmatprep.mubr.f32.mxu0 0.0
        %1652 = vmatmul.mubr.f32.gmra.mrb[0].mxu0 %v1570
        %v1653 = vpop.f32.mrb[0].mxu0
        %v1654 = vadd.f32 %v1542, %v1653
        %v1655 = vpop.f32.mrb[0].mxu0
        %1656 = vmatprep.mubr.f32.mxu0 0.0
        %1657 = vmatmul.mubr.f32.gmra.mrb[0].mxu0 %v1573
        %v1658 = vpop.f32.mrb[0].mxu0
        %v1659 = vadd.f32 %v1547, %v1658
        %v1660 = vpop.f32.mrb[0].mxu0
        %1661 = vmatprep.mubr.f32.mxu0 0.0
        %1662 = vmatmul.mubr.f32.gmra.mrb[0].mxu0 %v1576
        %v1663 = vpop.f32.mrb[0].mxu0
        %v1664 = vadd.f32 %v1552, %v1663
        %v1665 = vpop.f32.mrb[0].mxu0
        %1666 = vmatprep.mubr.f32.mxu0 0.0
        %1667 = vmatmul.mubr.f32.gmra.mrb[0].mxu0 %v1579
        %v1668 = vpop.f32.mrb[0].mxu0
        %v1669 = vadd.f32 %v1557, %v1668
        %v1670 = vpop.f32.mrb[0].mxu0
        %1671 = vmatprep.mubr.f32.mxu0 0.0
        %1672 = vmatmul.mubr.f32.gmra.mrb[0].mxu0 %v1582
        %v1673 = vpop.f32.mrb[0].mxu0
        %v1674 = vadd.f32 %v1562, %v1673
        %v1675 = vpop.f32.mrb[0].mxu0
        %1676 = vmatprep.mubr.f32.mxu0 0.0
        %1677 = vmatmul.mubr.f32.gmra.mrb[0].mxu0 %v1585
        %v1678 = vpop.f32.mrb[0].mxu0
        %v1679 = vadd.f32 %v1567, %v1678
        %v1680 = vpop.f32.mrb[0].mxu0
        %1681 = vdwg.mxu0
        %v1682 = vadd.f32 %v1499, %v1654
        %v1683 = vadd.f32 %v1504, %v1659
        %v1684 = vxor.u32 %v1682, 2147483648
        %v1685 = vxor.u32 %v1683, 2147483648
        %v1686 = vmul.f32 %v1684, 1.442695
        %v1687 = vpow.pop %v1686
        %v1688 = vmul.f32 %v1685, 1.442695
        %v1689 = vpow.pop %v1688
        %v1690 = vadd.f32 %v1687, 1.0
        %v1691 = vadd.f32 %v1689, 1.0
        %v1692 = vrcp.pop %v1690
        %v1693 = vmul.f32 1.0, %v1692
        %v1694 = vrcp.pop %v1691
        %v1695 = vmul.f32 1.0, %v1694
        %v1696 = vadd.f32 %v1509, %v1664
        %v1697 = vadd.f32 %v1514, %v1669
        %v1698 = vxor.u32 %v1696, 2147483648
        %v1699 = vxor.u32 %v1697, 2147483648
        %v1700 = vmul.f32 %v1698, 1.442695
        %v1701 = vpow.pop %v1700
        %v1702 = vmul.f32 %v1699, 1.442695
        %v1703 = vpow.pop %v1702
        %v1704 = vadd.f32 %v1701, 1.0
        %v1705 = vadd.f32 %v1703, 1.0
        %v1706 = vrcp.pop %v1704
        %v1707 = vmul.f32 1.0, %v1706
        %v1708 = vrcp.pop %v1705
        %v1709 = vmul.f32 1.0, %v1708
        %v1710 = vmul.f32 %v1693, %v1674
        %v1711 = vmul.f32 %v1695, %v1679
        %v1712 = vadd.f32 %v1519, %v1710
        %v1713 = vadd.f32 %v1524, %v1711
        %v1714 = vtanh.pop %v1712
        %v1715 = vtanh.pop %v1713
        %v1716 = vsub.f32 1.0, %v1707
        %v1717 = vsub.f32 1.0, %v1709
        %v1718 = vmul.f32 %v1716, %v1714
        %v1719 = vmul.f32 %v1717, %v1715
        %v1720 = vmul.f32 %v1707, %v725
        %v1721 = vmul.f32 %v1709, %v726
        %v1722 = vadd.f32 %v1718, %v1720
        %v1723 = vadd.f32 %v1719, %v1721
        %1724 = vst.msk [vmem:[#allocation2] sm:$0xff] %vm729, %v1722
        %1725 = vst.msk [vmem:[#allocation2 + $0x8] sm:$0xff] %vm729, %v1723
        %p1726 = scmp.eq.s32.totalorder %s29, 1
        // Predicated region
        $region93: #{tpu_custom_call.1} parent=87 // pred_check
          %p1727 = pneg %p1726
        $region94: #{tpu_custom_call.1} parent=87 // pred_check_branch
          %1729 = sbr.rel (%p1727) target = $region96
        $region95: #{tpu_custom_call.1} parent=87 // pred_region
          %v1730 = vld [vmem:[%s13] sm:$0xff]
          %v1731 = vld [vmem:[%s13 + $0x8] sm:$0xff]
          %v1732 = vld [vmem:[%s13 + $0x10] sm:$0xff]
          %v1733 = vld [vmem:[%s13 + $0x18] sm:$0xff]
          %v1734 = vld [vmem:[%s13 + $0x20] sm:$0xff]
          %v1735 = vld [vmem:[%s13 + $0x28] sm:$0xff]
          %v1736 = vld [vmem:[%s13 + $0x30] sm:$0xff]
          %v1737 = vld [vmem:[%s13 + $0x38] sm:$0xff]
          %v1738 = vld [vmem:[%s14] sm:$0xff]
          %v1739 = vld [vmem:[%s14 + $0x8] sm:$0xff]
          %v1740 = vld [vmem:[%s14 + $0x10] sm:$0xff]
          %v1741 = vld [vmem:[%s14 + $0x18] sm:$0xff]
          %v1742 = vld [vmem:[%s14 + $0x20] sm:$0xff]
          %v1743 = vld [vmem:[%s14 + $0x28] sm:$0xff]
          %v1744 = vld [vmem:[%s14 + $0x30] sm:$0xff]
          %v1745 = vld [vmem:[%s14 + $0x38] sm:$0xff]
          %1747 = vset.pattern.permute.xlu0 0
          %1748 = vperm.xlu0 %1747, %v1738
          %v1749 = vpop.permute.xlu0 %1748
          %1752 = vset.pattern.permute.xlu0 0
          %1753 = vperm.xlu0 %1752, %v1739
          %v1754 = vpop.permute.xlu0 %1753
          %1757 = vset.pattern.permute.xlu0 0
          %1758 = vperm.xlu0 %1757, %v1740
          %v1759 = vpop.permute.xlu0 %1758
          %1762 = vset.pattern.permute.xlu0 0
          %1763 = vperm.xlu0 %1762, %v1741
          %v1764 = vpop.permute.xlu0 %1763
          %1767 = vset.pattern.permute.xlu0 0
          %1768 = vperm.xlu0 %1767, %v1742
          %v1769 = vpop.permute.xlu0 %1768
          %1772 = vset.pattern.permute.xlu0 0
          %1773 = vperm.xlu0 %1772, %v1743
          %v1774 = vpop.permute.xlu0 %1773
          %1777 = vset.pattern.permute.xlu0 0
          %1778 = vperm.xlu0 %1777, %v1744
          %v1779 = vpop.permute.xlu0 %1778
          %1782 = vset.pattern.permute.xlu0 0
          %1783 = vperm.xlu0 %1782, %v1745
          %v1784 = vpop.permute.xlu0 %1783
          %v1787 = vsel %vm794, %v1730, 0
          %v1790 = vsel %vm794, %v1731, 0
          %v1793 = vsel %vm794, %v1732, 0
          %v1796 = vsel %vm794, %v1733, 0
          %v1799 = vsel %vm794, %v1734, 0
          %v1802 = vsel %vm794, %v1735, 0
          %v1805 = vsel %vm794, %v1736, 0
          %v1808 = vsel %vm794, %v1737, 0
          %1810 = vmatprep.subr.mxu0 0.0
          %1811 = vmatpush1.msra.mxu0 %v1722
          %1812 = vmatprep.subr.mxu0 0.0
          %1813 = vmatpush1.msra.mxu0 %v1723
          %1814 = vmatprep.subr.mxu0 0.0
          %1815 = vmatpush1.msra.mxu0 0.0
          %1816 = vmatprep.subr.mxu0 0.0
          %1817 = vmatpush1.msra.mxu0 0.0
          %1818 = vmatprep.subr.mxu0 0.0
          %1819 = vmatpush1.msra.mxu0 0.0
          %1820 = vmatprep.subr.mxu0 0.0
          %1821 = vmatpush1.msra.mxu0 0.0
          %1822 = vmatprep.subr.mxu0 0.0
          %1823 = vmatpush1.msra.mxu0 0.0
          %1824 = vmatprep.subr.mxu0 0.0
          %1825 = vmatpush1.msra.mxu0 0.0
          %1826 = vmatprep.subr.mxu0 0.0
          %1827 = vmatpush1.msra.mxu0 0.0
          %1828 = vmatprep.subr.mxu0 0.0
          %1829 = vmatpush1.msra.mxu0 0.0
          %1830 = vmatprep.subr.mxu0 0.0
          %1831 = vmatpush1.msra.mxu0 0.0
          %1832 = vmatprep.subr.mxu0 0.0
          %1833 = vmatpush1.msra.mxu0 0.0
          %1834 = vmatprep.subr.mxu0 0.0
          %1835 = vmatpush1.msra.mxu0 0.0
          %1836 = vmatprep.subr.mxu0 0.0
          %1837 = vmatpush1.msra.mxu0 0.0
          %1838 = vmatprep.subr.mxu0 0.0
          %1839 = vmatpush1.msra.mxu0 0.0
          %1840 = vmatprep.subr.mxu0 0.0
          %1841 = vmatpush1.msra.mxu0 0.0
          %1842 = vmatprep.subr.mxu0 0.0
          %1843 = vmatpush1.msra.mxu0 0.0
          %1844 = vmatprep.subr.mxu0 0.0
          %1845 = vmatpush1.msra.mxu0 0.0
          %1846 = vmatprep.subr.mxu0 0.0
          %1847 = vmatpush1.msra.mxu0 0.0
          %1848 = vmatprep.subr.mxu0 0.0
          %1849 = vmatpush1.msra.mxu0 0.0
          %1850 = vmatprep.subr.mxu0 0.0
          %1851 = vmatpush1.msra.mxu0 0.0
          %1852 = vmatprep.subr.mxu0 0.0
          %1853 = vmatpush1.msra.mxu0 0.0
          %1854 = vmatprep.subr.mxu0 0.0
          %1855 = vmatpush1.msra.mxu0 0.0
          %1856 = vmatprep.subr.mxu0 0.0
          %1857 = vmatpush1.msra.mxu0 0.0
          %1858 = vmatprep.subr.mxu0 0.0
          %1859 = vmatpush1.msra.mxu0 0.0
          %1860 = vmatprep.subr.mxu0 0.0
          %1861 = vmatpush1.msra.mxu0 0.0
          %1862 = vmatprep.subr.mxu0 0.0
          %1863 = vmatpush1.msra.mxu0 0.0
          %1864 = vmatprep.subr.mxu0 0.0
          %1865 = vmatpush1.msra.mxu0 0.0
          %1866 = vmatprep.subr.mxu0 0.0
          %1867 = vmatpush1.msra.mxu0 0.0
          %1868 = vmatprep.subr.mxu0 0.0
          %1869 = vmatpush1.msra.mxu0 0.0
          %1870 = vmatprep.subr.mxu0 0.0
          %1871 = vmatpush1.msra.mxu0 0.0
          %1872 = vmatprep.subr.mxu0 0.0
          %1873 = vmatpush1.msra.mxu0 0.0
          %1874 = vmatprep.mubr.f32.mxu0 0.0
          %1875 = vmatmul.mubr.f32.gmra.mrb[0].mxu0 %v1787
          %v1876 = vpop.f32.mrb[0].mxu0
          %v1877 = vadd.f32 %v1749, %v1876
          %v1878 = vpop.f32.mrb[0].mxu0
          %1879 = vmatprep.mubr.f32.mxu0 0.0
          %1880 = vmatmul.mubr.f32.gmra.mrb[0].mxu0 %v1790
          %v1881 = vpop.f32.mrb[0].mxu0
          %v1882 = vadd.f32 %v1754, %v1881
          %v1883 = vpop.f32.mrb[0].mxu0
          %1884 = vmatprep.mubr.f32.mxu0 0.0
          %1885 = vmatmul.mubr.f32.gmra.mrb[0].mxu0 %v1793
          %v1886 = vpop.f32.mrb[0].mxu0
          %v1887 = vadd.f32 %v1759, %v1886
          %v1888 = vpop.f32.mrb[0].mxu0
          %1889 = vmatprep.mubr.f32.mxu0 0.0
          %1890 = vmatmul.mubr.f32.gmra.mrb[0].mxu0 %v1796
          %v1891 = vpop.f32.mrb[0].mxu0
          %v1892 = vadd.f32 %v1764, %v1891
          %v1893 = vpop.f32.mrb[0].mxu0
          %1894 = vmatprep.mubr.f32.mxu0 0.0
          %1895 = vmatmul.mubr.f32.gmra.mrb[0].mxu0 %v1799
          %v1896 = vpop.f32.mrb[0].mxu0
          %v1897 = vadd.f32 %v1769, %v1896
          %v1898 = vpop.f32.mrb[0].mxu0
          %1899 = vmatprep.mubr.f32.mxu0 0.0
          %1900 = vmatmul.mubr.f32.gmra.mrb[0].mxu0 %v1802
          %v1901 = vpop.f32.mrb[0].mxu0
          %v1902 = vadd.f32 %v1774, %v1901
          %v1903 = vpop.f32.mrb[0].mxu0
          %1904 = vmatprep.mubr.f32.mxu0 0.0
          %1905 = vmatmul.mubr.f32.gmra.mrb[0].mxu0 %v1805
          %v1906 = vpop.f32.mrb[0].mxu0
          %v1907 = vadd.f32 %v1779, %v1906
          %v1908 = vpop.f32.mrb[0].mxu0
          %1909 = vmatprep.mubr.f32.mxu0 0.0
          %1910 = vmatmul.mubr.f32.gmra.mrb[0].mxu0 %v1808
          %v1911 = vpop.f32.mrb[0].mxu0
          %v1912 = vadd.f32 %v1784, %v1911
          %v1913 = vpop.f32.mrb[0].mxu0
          %1914 = vdwg.mxu0
          %v1915 = vld [vmem:[%s15] sm:$0x3]
          %v1916 = vld [vmem:[%s16] sm:$0x3]
          %1918 = vset.pattern.permute.xlu0 0
          %1919 = vperm.xlu0 %1918, %v1916
          %v1920 = vpop.permute.xlu0 %1919
          %v1923 = vsel %vm794, %v1915, 0
          %1925 = vmatprep.subr.mxu0 0.0
          %1926 = vmatpush1.msra.mxu0 %v1722
          %1927 = vmatprep.subr.mxu0 0.0
          %1928 = vmatpush1.msra.mxu0 %v1723
          %1929 = vmatprep.subr.mxu0 0.0
          %1930 = vmatpush1.msra.mxu0 0.0
          %1931 = vmatprep.subr.mxu0 0.0
          %1932 = vmatpush1.msra.mxu0 0.0
          %1933 = vmatprep.subr.mxu0 0.0
          %1934 = vmatpush1.msra.mxu0 0.0
          %1935 = vmatprep.subr.mxu0 0.0
          %1936 = vmatpush1.msra.mxu0 0.0
          %1937 = vmatprep.subr.mxu0 0.0
          %1938 = vmatpush1.msra.mxu0 0.0
          %1939 = vmatprep.subr.mxu0 0.0
          %1940 = vmatpush1.msra.mxu0 0.0
          %1941 = vmatprep.subr.mxu0 0.0
          %1942 = vmatpush1.msra.mxu0 0.0
          %1943 = vmatprep.subr.mxu0 0.0
          %1944 = vmatpush1.msra.mxu0 0.0
          %1945 = vmatprep.subr.mxu0 0.0
          %1946 = vmatpush1.msra.mxu0 0.0
          %1947 = vmatprep.subr.mxu0 0.0
          %1948 = vmatpush1.msra.mxu0 0.0
          %1949 = vmatprep.subr.mxu0 0.0
          %1950 = vmatpush1.msra.mxu0 0.0
          %1951 = vmatprep.subr.mxu0 0.0
          %1952 = vmatpush1.msra.mxu0 0.0
          %1953 = vmatprep.subr.mxu0 0.0
          %1954 = vmatpush1.msra.mxu0 0.0
          %1955 = vmatprep.subr.mxu0 0.0
          %1956 = vmatpush1.msra.mxu0 0.0
          %1957 = vmatprep.subr.mxu0 0.0
          %1958 = vmatpush1.msra.mxu0 0.0
          %1959 = vmatprep.subr.mxu0 0.0
          %1960 = vmatpush1.msra.mxu0 0.0
          %1961 = vmatprep.subr.mxu0 0.0
          %1962 = vmatpush1.msra.mxu0 0.0
          %1963 = vmatprep.subr.mxu0 0.0
          %1964 = vmatpush1.msra.mxu0 0.0
          %1965 = vmatprep.subr.mxu0 0.0
          %1966 = vmatpush1.msra.mxu0 0.0
          %1967 = vmatprep.subr.mxu0 0.0
          %1968 = vmatpush1.msra.mxu0 0.0
          %1969 = vmatprep.subr.mxu0 0.0
          %1970 = vmatpush1.msra.mxu0 0.0
          %1971 = vmatprep.subr.mxu0 0.0
          %1972 = vmatpush1.msra.mxu0 0.0
          %1973 = vmatprep.subr.mxu0 0.0
          %1974 = vmatpush1.msra.mxu0 0.0
          %1975 = vmatprep.subr.mxu0 0.0
          %1976 = vmatpush1.msra.mxu0 0.0
          %1977 = vmatprep.subr.mxu0 0.0
          %1978 = vmatpush1.msra.mxu0 0.0
          %1979 = vmatprep.subr.mxu0 0.0
          %1980 = vmatpush1.msra.mxu0 0.0
          %1981 = vmatprep.subr.mxu0 0.0
          %1982 = vmatpush1.msra.mxu0 0.0
          %1983 = vmatprep.subr.mxu0 0.0
          %1984 = vmatpush1.msra.mxu0 0.0
          %1985 = vmatprep.subr.mxu0 0.0
          %1986 = vmatpush1.msra.mxu0 0.0
          %1987 = vmatprep.subr.mxu0 0.0
          %1988 = vmatpush1.msra.mxu0 0.0
          %1989 = vmatprep.mubr.f32.mxu0 0.0
          %1990 = vmatmul.mubr.f32.gmra.mrb[0].mxu0 %v1923
          %v1991 = vpop.f32.mrb[0].mxu0
          %v1992 = vadd.f32 %v1920, %v1991
          %v1993 = vpop.f32.mrb[0].mxu0
          %1994 = vdwg.mxu0
          %v1995 = vxor.u32 %v1992, 2147483648
          %v1996 = vmul.f32 %v1995, 1.442695
          %v1997 = vpow.pop %v1996
          %v1998 = vadd.f32 %v1997, 1.0
          %v1999 = vrcp.pop %v1998
          %v2000 = vmul.f32 1.0, %v1999
          %v2001 = vlaneseq
          %v2002 = vshrl.u32 %v2001, 7
          %v2003 = vsub.s32 0, %v2002
          %v2004 = vrot.slane %v2000, %v2003
          %v2005 = vmul.f32 %v1877, %v2004
          %v2006 = vmul.f32 %v1882, %v2004
          %v2007 = vmul.f32 %v1887, %v2004
          %v2008 = vmul.f32 %v1892, %v2004
          %v2009 = vlaneseq
          %v2010 = vshrl.u32 %v2009, 7
          %v2011 = vsub.s32 1, %v2010
          %v2012 = vrot.slane %v2000, %v2011
          %v2013 = vmul.f32 %v1897, %v2012
          %v2014 = vmul.f32 %v1902, %v2012
          %v2015 = vmul.f32 %v1907, %v2012
          %v2016 = vmul.f32 %v1912, %v2012
          %v2017 = vld [vmem:[%s2] sm:$0x1]
          %v2018 = vunpack.c.l.bf16 %v2017
          %v2020 = vsel %vm729, %v2018, 0
          %v2023 = vsel %vm729, %v2005, 0
          %v2026 = vsel %vm729, %v2006, 0
          %v2029 = vsel %vm729, %v2007, 0
          %v2032 = vsel %vm729, %v2008, 0
          %v2035 = vsel %vm729, %v2013, 0
          %v2038 = vsel %vm729, %v2014, 0
          %v2041 = vsel %vm729, %v2015, 0
          %v2044 = vsel %vm729, %v2016, 0
          %2046 = vmatprep.subr.mxu0 0.0
          %2047 = vmatpush1.xpose.msra.mxu0 %v2023
          %2048 = vmatprep.subr.mxu0 0.0
          %2049 = vmatpush1.xpose.msra.mxu0 %v2026
          %2050 = vmatprep.subr.mxu0 0.0
          %2051 = vmatpush1.xpose.msra.mxu0 %v2029
          %2052 = vmatprep.subr.mxu0 0.0
          %2053 = vmatpush1.xpose.msra.mxu0 %v2032
          %2054 = vmatprep.subr.mxu0 0.0
          %2055 = vmatpush1.xpose.msra.mxu0 %v2035
          %2056 = vmatprep.subr.mxu0 0.0
          %2057 = vmatpush1.xpose.msra.mxu0 %v2038
          %2058 = vmatprep.subr.mxu0 0.0
          %2059 = vmatpush1.xpose.msra.mxu0 %v2041
          %2060 = vmatprep.subr.mxu0 0.0
          %2061 = vmatpush1.xpose.msra.mxu0 %v2044
          %2062 = vmatprep.subr.mxu0 0.0
          %2063 = vmatpush1.xpose.msra.mxu0 0.0
          %2064 = vmatprep.subr.mxu0 0.0
          %2065 = vmatpush1.xpose.msra.mxu0 0.0
          %2066 = vmatprep.subr.mxu0 0.0
          %2067 = vmatpush1.xpose.msra.mxu0 0.0
          %2068 = vmatprep.subr.mxu0 0.0
          %2069 = vmatpush1.xpose.msra.mxu0 0.0
          %2070 = vmatprep.subr.mxu0 0.0
          %2071 = vmatpush1.xpose.msra.mxu0 0.0
          %2072 = vmatprep.subr.mxu0 0.0
          %2073 = vmatpush1.xpose.msra.mxu0 0.0
          %2074 = vmatprep.subr.mxu0 0.0
          %2075 = vmatpush1.xpose.msra.mxu0 0.0
          %2076 = vmatprep.subr.mxu0 0.0
          %2077 = vmatpush1.xpose.msra.mxu0 0.0
          %2078 = vmatprep.subr.mxu0 0.0
          %2079 = vmatpush1.xpose.msra.mxu0 0.0
          %2080 = vmatprep.subr.mxu0 0.0
          %2081 = vmatpush1.xpose.msra.mxu0 0.0
          %2082 = vmatprep.subr.mxu0 0.0
          %2083 = vmatpush1.xpose.msra.mxu0 0.0
          %2084 = vmatprep.subr.mxu0 0.0
          %2085 = vmatpush1.xpose.msra.mxu0 0.0
          %2086 = vmatprep.subr.mxu0 0.0
          %2087 = vmatpush1.xpose.msra.mxu0 0.0
          %2088 = vmatprep.subr.mxu0 0.0
          %2089 = vmatpush1.xpose.msra.mxu0 0.0
          %2090 = vmatprep.subr.mxu0 0.0
          %2091 = vmatpush1.xpose.msra.mxu0 0.0
          %2092 = vmatprep.subr.mxu0 0.0
          %2093 = vmatpush1.xpose.msra.mxu0 0.0
          %2094 = vmatprep.subr.mxu0 0.0
          %2095 = vmatpush1.xpose.msra.mxu0 0.0
          %2096 = vmatprep.subr.mxu0 0.0
          %2097 = vmatpush1.xpose.msra.mxu0 0.0
          %2098 = vmatprep.subr.mxu0 0.0
          %2099 = vmatpush1.xpose.msra.mxu0 0.0
          %2100 = vmatprep.subr.mxu0 0.0
          %2101 = vmatpush1.xpose.msra.mxu0 0.0
          %2102 = vmatprep.subr.mxu0 0.0
          %2103 = vmatpush1.xpose.msra.mxu0 0.0
          %2104 = vmatprep.subr.mxu0 0.0
          %2105 = vmatpush1.xpose.msra.mxu0 0.0
          %2106 = vmatprep.subr.mxu0 0.0
          %2107 = vmatpush1.xpose.msra.mxu0 0.0
          %2108 = vmatprep.subr.mxu0 0.0
          %2109 = vmatpush1.xpose.msra.mxu0 0.0
          %2110 = vmatprep.mubr.f32.mxu0 0.0
          %2111 = vmatmul.mubr.f32.gmra.mrb[0].mxu0 %v2020
          %v2112 = vpop.f32.mrb[0].mxu0
          %v2113 = vadd.f32 0.0, %v2112
          %v2114 = vpop.f32.mrb[0].mxu0
          %2115 = vdwg.mxu0
          %vm2116 = vcmask 517120
          %2117 = vst.msk [vmem:[#allocation3] sm:$0x3] %vm2116, %v2113
        $region96: #{tpu_custom_call.1} parent=87 // pred_fallthru
          _
        // Predicated region
        $region97: #{tpu_custom_call.1} parent=87 // pred_check
          %p2118 = pneg %p449
        $region98: #{tpu_custom_call.1} parent=87 // pred_check_branch
          %2120 = sbr.rel (%p2118) target = $region100
        $region99: #{tpu_custom_call.1} parent=87 // pred_region
          %s2122 = ssub.s32 32, 32
          %2123 = vsyncadd [#allocation4], %s2122
          %s2125 = sshll.u32 [#allocation3], 4
          %s2126 = int_to_ptr.vmem [resolvable:$true] %s2125
          %2128 = dma.vmem_to_hbm [thread:$0]  %s2126, 32, %s17, [#allocation4]
        $region100: #{tpu_custom_call.1} parent=87 // pred_fallthru
          _
        // Predicated region
        $region101: #{tpu_custom_call.1} parent=87 // pred_check
          %p2129 = pneg %p449
        $region102: #{tpu_custom_call.1} parent=87 // pred_check_branch
          %2131 = sbr.rel (%p2129) target = $region104
        $region103: #{tpu_custom_call.1} parent=87 // pred_region
          %2132 = dma.done [#allocation4], 32
        $region104: #{tpu_custom_call.1} parent=87 // pred_fallthru
          _
      $region88: #{tpu_custom_call.1} parent=5 // pred_fallthru
        _
      %p2133 = scmp.le.s32.totalorder 2, %s24
      // Predicated region
      $region105: #{tpu_custom_call.1} parent=5 // pred_check
        %p2134 = pneg %p2133
      $region106: #{tpu_custom_call.1} parent=5 // pred_check_branch
        %2136 = sbr.rel (%p2134) target = $region108
      $region107: #{tpu_custom_call.1} parent=5 // pred_region
        %s2137 = ssub.s32 %s24, 2
      $region108: #{tpu_custom_call.1} parent=5 // pred_fallthru
        _
    $region6: #{tpu_custom_call.1} parent=1 // loop_footer
      %s28 = sadd.s32 1, %s24
    $region7: #{tpu_custom_call.1} parent=1 // loop_footer_branch
      %23 = sbr.rel target = $region3
    $region8: #{tpu_custom_call.1} parent=1 // loop_exit
      _
    %2138 = vsyncpa [#allocation4], 1
    %s2139 = scalar_lea.sflag [#allocation4], 1
    %2140 = vsyncpa %s2139, 1

</llo_original>
